<compile_context>
chip_gen: v5e
topology: v5e:2x2
jax: 0.10.0
libtpu: 0.0.40
codegen_flags: <defaults>
</compile_context>

<pallas_src>
import functools

import jax
import jax.numpy as jnp
from jax.experimental import pallas as pl
from jax.experimental.pallas import tpu as pltpu

_SUBLANE = 8    # f32 sublane tile
_LANE = 128     # lane tile


# ----------------------------- fused kernel ----------------------------------
def _make_fused_kernel(num_layers, Bp, S, H):
    """Fused kernel: num_layers LSTM layers -> last-step FC -> sigmoid."""

    def kernel(*refs):
        x_ref = refs[0]
        layer_refs = refs[1:1 + 3 * num_layers]
        fcw_ref = refs[1 + 3 * num_layers]          # (H, O_pad) lane-padded
        fcb_ref = refs[2 + 3 * num_layers]          # (1, O_pad)
        out_ref = refs[3 + 3 * num_layers]          # (Bp, O_pad)
        seq_sc = refs[4 + 3 * num_layers]           # (S*Bp, H) inter-layer VMEM buf

        seq_in = x_ref[...]                         # (S*Bp, in_dim), time-major
        h = None
        for l in range(num_layers):
            wih = layer_refs[3 * l][...]            # (in_dim, 4H), g-cols pre-scaled x2
            whh = layer_refs[3 * l + 1][...]        # (H, 4H),      g-cols pre-scaled x2
            b = layer_refs[3 * l + 2][...]          # (1, 4H),      g-cols pre-scaled x2

            # Hoisted input projection: one matmul covering all S timesteps.
            # gx is fully materialized here, so seq_sc can be overwritten below.
            gx = jnp.dot(seq_in, wih,
                         preferred_element_type=jnp.float32) + b   # (S*Bp, 4H)

            h = jnp.zeros((Bp, H), jnp.float32)
            c = jnp.zeros((Bp, H), jnp.float32)
            for t in range(S):                      # S small & static -> unrolled
                # (8, 4H) slice = whole (8,128) tiles thanks to Bp sublane padding.
                gates = gx[t * Bp:(t + 1) * Bp, :] + jnp.dot(
                    h, whh, preferred_element_type=jnp.float32)    # (Bp, 4H)
                sig = jax.nn.sigmoid(gates)         # ONE full-width EUP pass
                i_g = sig[:, 0 * H:1 * H]
                f_g = sig[:, 1 * H:2 * H]
                g_g = 2.0 * sig[:, 2 * H:3 * H] - 1.0  # tanh(x) = 2*sigmoid(2x) - 1
                o_g = sig[:, 3 * H:4 * H]
                c = f_g * c + i_g * g_g
                h = o_g * jnp.tanh(c)               # only remaining tanh per step
                if l < num_layers - 1:
                    seq_sc[t * Bp:(t + 1) * Bp, :] = h   # stays in VMEM scratch
            if l < num_layers - 1:
                seq_in = seq_sc[...]
            # TODO(synk): nn.LSTM dropout=0.2 between layers is training-mode
            # only; inference (eval) omits it.

        # Last-timestep FC + sigmoid; lane-padded to 128 so the store is a full
        # unmasked vreg write (real output columns sliced off in the wrapper).
        logits = jnp.dot(h, fcw_ref[...],
                         preferred_element_type=jnp.float32) + fcb_ref[...]
        out_ref[...] = jax.nn.sigmoid(logits)

    return kernel


# ------------------------------- model wrapper --------------------------------
@functools.partial(jax.jit, static_argnames=("out_size",))
def attack_detection_forward(x, kparams, out_size):
    B, S, I = x.shape
    H = kparams["lstm"][0]["whh_t"].shape[0]
    Op = kparams["fc_w_t"].shape[1]                 # lane-padded output width
    num_layers = len(kparams["lstm"])
    Bp = ((B + _SUBLANE - 1) // _SUBLANE) * _SUBLANE

    # Time-major, batch padded so each timestep owns a full (8,128) sublane tile.
    x_tm = jnp.transpose(x, (1, 0, 2))              # (S, B, I)
    x_tm = jnp.pad(x_tm, ((0, 0), (0, Bp - B), (0, 0)))
    x2d = x_tm.reshape(S * Bp, I)

    flat_inputs = [x2d]
    in_specs = [pl.BlockSpec((S * Bp, I), lambda: (0, 0))]
    for layer in kparams["lstm"]:
        in_dim = layer["wih_t"].shape[0]
        flat_inputs += [layer["wih_t"], layer["whh_t"], layer["bias"]]
        in_specs += [
            pl.BlockSpec((in_dim, 4 * H), lambda: (0, 0)),
            pl.BlockSpec((H, 4 * H), lambda: (0, 0)),
            pl.BlockSpec((1, 4 * H), lambda: (0, 0)),
        ]
    flat_inputs += [kparams["fc_w_t"], kparams["fc_b"]]
    in_specs += [pl.BlockSpec((H, Op), lambda: (0, 0)),
                 pl.BlockSpec((1, Op), lambda: (0, 0))]

    kernel = _make_fused_kernel(num_layers=num_layers, Bp=Bp, S=S, H=H)

    out_padded = pl.pallas_call(
        kernel,
        out_shape=jax.ShapeDtypeStruct((Bp, Op), jnp.float32),
        in_specs=in_specs,
        out_specs=pl.BlockSpec((Bp, Op), lambda: (0, 0)),
        scratch_shapes=[pltpu.VMEM((S * Bp, H), jnp.float32)],
        compiler_params=pltpu.CompilerParams(
            # Let XLA fuse the transpose/pad/reshape of x into the Mosaic call
            # instead of paying a separate launch + HBM round trip.
            allow_input_fusion=[True] + [False] * (len(flat_inputs) - 1)),
    )(*flat_inputs)

    # Drop batch-padding rows and lane-padding columns.
    return out_padded[:B, :out_size]


# --------------------------- params / reference --------------------------------
def init_params(key, input_size, hidden_size, num_layers, output_size):
    """Deterministic synthetic init matching PyTorch shapes (uniform +-1/sqrt(H))."""
    bound = 1.0 / jnp.sqrt(jnp.float32(hidden_size))
    params = {"lstm": []}
    in_dim = input_size
    for _ in range(num_layers):
        key, k1, k2, k3, k4 = jax.random.split(key, 5)
        w_ih = jax.random.uniform(k1, (4 * hidden_size, in_dim), jnp.float32, -bound, bound)
        w_hh = jax.random.uniform(k2, (4 * hidden_size, hidden_size), jnp.float32, -bound, bound)
        b_ih = jax.random.uniform(k3, (4 * hidden_size,), jnp.float32, -bound, bound)
        b_hh = jax.random.uniform(k4, (4 * hidden_size,), jnp.float32, -bound, bound)
        params["lstm"].append({
            "wih_t": w_ih.T,                                  # (in, 4H)
            "whh_t": w_hh.T,                                  # (H, 4H)
            "bias": (b_ih + b_hh).reshape(1, 4 * hidden_size),
        })
        in_dim = hidden_size
    key, k5, k6 = jax.random.split(key, 3)
    fc_w = jax.random.uniform(k5, (output_size, hidden_size), jnp.float32, -bound, bound)
    fc_b = jax.random.uniform(k6, (output_size,), jnp.float32, -bound, bound)
    params["fc_w_t"] = fc_w.T                                 # (H, O)
    params["fc_b"] = fc_b.reshape(1, output_size)
    return params


def prepare_kernel_params(params):
    """One-time kernel-side weight prep:
       - scale the g-gate (cell-candidate) columns by 2 so tanh(x) can be
         recovered as 2*sigmoid(2x)-1 from the shared full-width sigmoid,
       - zero-pad the FC weight/bias to 128 output lanes for a lane-dense store."""
    H = params["lstm"][0]["whh_t"].shape[0]
    scale = jnp.ones((4 * H,), jnp.float32).at[2 * H:3 * H].set(2.0)
    kp = {"lstm": []}
    for layer in params["lstm"]:
        kp["lstm"].append({
            "wih_t": layer["wih_t"] * scale,
            "whh_t": layer["whh_t"] * scale,
            "bias": layer["bias"] * scale,
        })
    O = params["fc_w_t"].shape[1]
    Op = ((O + _LANE - 1) // _LANE) * _LANE
    kp["fc_w_t"] = jnp.zeros((H, Op), jnp.float32).at[:, :O].set(params["fc_w_t"])
    kp["fc_b"] = jnp.zeros((1, Op), jnp.float32).at[:, :O].set(params["fc_b"])
    return kp


def reference_forward(x, params):
    """Pure-JAX reference (matches PyTorch nn.LSTM eval-mode semantics)."""
    B = x.shape[0]
    h_seq = x
    for layer in params["lstm"]:
        H = layer["whh_t"].shape[0]
        wih_t, whh_t, bias = layer["wih_t"], layer["whh_t"], layer["bias"]

        def step(carry, x_t, wih_t=wih_t, whh_t=whh_t, bias=bias, H=H):
            h, c = carry
            gates = x_t @ wih_t + h @ whh_t + bias
            i = jax.nn.sigmoid(gates[:, 0 * H:1 * H])
            f = jax.nn.sigmoid(gates[:, 1 * H:2 * H])
            g = jnp.tanh(gates[:, 2 * H:3 * H])
            o = jax.nn.sigmoid(gates[:, 3 * H:4 * H])
            c = f * c + i * g
            h = o * jnp.tanh(c)
            return (h, c), h

        init = (jnp.zeros((B, H), jnp.float32), jnp.zeros((B, H), jnp.float32))
        _, hs = jax.lax.scan(step, init, jnp.transpose(h_seq, (1, 0, 2)))
        h_seq = jnp.transpose(hs, (1, 0, 2))
    h_last = h_seq[:, -1, :]
    return jax.nn.sigmoid(h_last @ params["fc_w_t"] + params["fc_b"])


if __name__ == "__main__":
    # Small shapes consistent with the module's forward:
    batch, seq = 2, 8
    input_size, hidden_size, num_layers, output_size = 16, 32, 2, 1

    key = jax.random.PRNGKey(0)
    key, kx = jax.random.split(key)
    x = jax.random.normal(kx, (batch, seq, input_size), jnp.float32)
    params = init_params(key, input_size, hidden_size, num_layers, output_size)
    kparams = prepare_kernel_params(params)   # one-time prep, outside the call path

    out = attack_detection_forward(x, kparams, out_size=output_size)
    out = jax.block_until_ready(out)

    assert out.shape == (batch, output_size)
    assert bool(jnp.all((out >= 0.0) & (out <= 1.0)))

    ref = reference_forward(x, params)
    assert bool(jnp.allclose(out, ref, rtol=1e-4, atol=1e-4)), (out, ref)

    print("KERNEL_OK")
</pallas_src>

<mosaic_0001>
module attributes {stable_mosaic.version = 11 : i64} {
  func.func @kernel(%arg0: memref<64x16xf32, #tpu.memory_space<vmem>>, %arg1: memref<16x128xf32, #tpu.memory_space<vmem>>, %arg2: memref<32x128xf32, #tpu.memory_space<vmem>>, %arg3: memref<1x128xf32, #tpu.memory_space<vmem>>, %arg4: memref<32x128xf32, #tpu.memory_space<vmem>>, %arg5: memref<32x128xf32, #tpu.memory_space<vmem>>, %arg6: memref<1x128xf32, #tpu.memory_space<vmem>>, %arg7: memref<32x128xf32, #tpu.memory_space<vmem>>, %arg8: memref<1x128xf32, #tpu.memory_space<vmem>>, %arg9: memref<8x128xf32, #tpu.memory_space<vmem>>, %arg10: memref<64x32xf32, #tpu.memory_space<vmem>>) attributes {dimension_semantics = [], scalar_prefetch = 0 : i64, scratch_operands = 1 : i64, tpu.core_type = #tpu.core_type<tc>} {
    %c0 = arith.constant 0 : index
    %c0_0 = arith.constant 0 : index
    %0 = vector.load %arg0[%c0, %c0_0] : memref<64x16xf32, #tpu.memory_space<vmem>>, vector<64x16xf32>
    %c0_1 = arith.constant 0 : index
    %c0_2 = arith.constant 0 : index
    %1 = vector.load %arg1[%c0_1, %c0_2] : memref<16x128xf32, #tpu.memory_space<vmem>>, vector<16x128xf32>
    %c0_3 = arith.constant 0 : index
    %c0_4 = arith.constant 0 : index
    %2 = vector.load %arg2[%c0_3, %c0_4] : memref<32x128xf32, #tpu.memory_space<vmem>>, vector<32x128xf32>
    %c0_5 = arith.constant 0 : index
    %c0_6 = arith.constant 0 : index
    %3 = vector.load %arg3[%c0_5, %c0_6] : memref<1x128xf32, #tpu.memory_space<vmem>>, vector<1x128xf32>
    %cst = arith.constant dense<0.000000e+00> : vector<64x128xf32>
    %4 = tpu.matmul %0, %1, %cst {dimension_numbers = #tpu.dot_dimension_numbers<[1], [0], [0], [1], [0, 0, 1, 1], [], []>} : vector<64x16xf32>, vector<16x128xf32>, vector<64x128xf32> -> vector<64x128xf32>
    %5 = vector.broadcast %3 : vector<1x128xf32> to vector<64x128xf32>
    %6 = arith.addf %4, %5 : vector<64x128xf32>
    %cst_7 = arith.constant 0.000000e+00 : f32
    %7 = vector.broadcast %cst_7 : f32 to vector<8x32xf32>
    %cst_8 = arith.constant 0.000000e+00 : f32
    %8 = vector.broadcast %cst_8 : f32 to vector<8x32xf32>
    %9 = vector.extract_strided_slice %6 {offsets = [0, 0], sizes = [8, 128], strides = [1, 1]} : vector<64x128xf32> to vector<8x128xf32>
    %cst_9 = arith.constant dense<0.000000e+00> : vector<8x128xf32>
    %10 = tpu.matmul %7, %2, %cst_9 {dimension_numbers = #tpu.dot_dimension_numbers<[1], [0], [0], [1], [0, 0, 1, 1], [], []>} : vector<8x32xf32>, vector<32x128xf32>, vector<8x128xf32> -> vector<8x128xf32>
    %11 = arith.addf %9, %10 : vector<8x128xf32>
    %12 = arith.negf %11 : vector<8x128xf32>
    %13 = math.exp %12 : vector<8x128xf32>
    %cst_10 = arith.constant 1.000000e+00 : f32
    %14 = vector.broadcast %cst_10 : f32 to vector<8x128xf32>
    %15 = arith.addf %14, %13 : vector<8x128xf32>
    %16 = arith.divf %14, %15 : vector<8x128xf32>
    %17 = vector.extract_strided_slice %16 {offsets = [0, 0], sizes = [8, 32], strides = [1, 1]} : vector<8x128xf32> to vector<8x32xf32>
    %18 = vector.extract_strided_slice %16 {offsets = [0, 32], sizes = [8, 32], strides = [1, 1]} : vector<8x128xf32> to vector<8x32xf32>
    %19 = vector.extract_strided_slice %16 {offsets = [0, 64], sizes = [8, 32], strides = [1, 1]} : vector<8x128xf32> to vector<8x32xf32>
    %cst_11 = arith.constant 2.000000e+00 : f32
    %20 = vector.broadcast %cst_11 : f32 to vector<8x32xf32>
    %21 = arith.mulf %20, %19 : vector<8x32xf32>
    %cst_12 = arith.constant 1.000000e+00 : f32
    %22 = vector.broadcast %cst_12 : f32 to vector<8x32xf32>
    %23 = arith.subf %21, %22 : vector<8x32xf32>
    %24 = vector.extract_strided_slice %16 {offsets = [0, 96], sizes = [8, 32], strides = [1, 1]} : vector<8x128xf32> to vector<8x32xf32>
    %25 = arith.mulf %18, %8 : vector<8x32xf32>
    %26 = arith.mulf %17, %23 : vector<8x32xf32>
    %27 = arith.addf %25, %26 : vector<8x32xf32>
    %28 = math.tanh %27 : vector<8x32xf32>
    %29 = arith.mulf %24, %28 : vector<8x32xf32>
    %c0_13 = arith.constant 0 : index
    %c0_14 = arith.constant 0 : index
    %30 = vector.load %arg10[%c0_13, %c0_14] : memref<64x32xf32, #tpu.memory_space<vmem>>, vector<8x32xf32>
    tpu.vector_store %arg10[%c0_13, %c0_14], %29 {strides = array<i32>} : memref<64x32xf32, #tpu.memory_space<vmem>>, vector<8x32xf32>,
    %31 = vector.extract_strided_slice %6 {offsets = [8, 0], sizes = [8, 128], strides = [1, 1]} : vector<64x128xf32> to vector<8x128xf32>
    %cst_15 = arith.constant dense<0.000000e+00> : vector<8x128xf32>
    %32 = tpu.matmul %29, %2, %cst_15 {dimension_numbers = #tpu.dot_dimension_numbers<[1], [0], [0], [1], [0, 0, 1, 1], [], []>} : vector<8x32xf32>, vector<32x128xf32>, vector<8x128xf32> -> vector<8x128xf32>
    %33 = arith.addf %31, %32 : vector<8x128xf32>
    %34 = arith.negf %33 : vector<8x128xf32>
    %35 = math.exp %34 : vector<8x128xf32>
    %cst_16 = arith.constant 1.000000e+00 : f32
    %36 = vector.broadcast %cst_16 : f32 to vector<8x128xf32>
    %37 = arith.addf %36, %35 : vector<8x128xf32>
    %38 = arith.divf %36, %37 : vector<8x128xf32>
    %39 = vector.extract_strided_slice %38 {offsets = [0, 0], sizes = [8, 32], strides = [1, 1]} : vector<8x128xf32> to vector<8x32xf32>
    %40 = vector.extract_strided_slice %38 {offsets = [0, 32], sizes = [8, 32], strides = [1, 1]} : vector<8x128xf32> to vector<8x32xf32>
    %41 = vector.extract_strided_slice %38 {offsets = [0, 64], sizes = [8, 32], strides = [1, 1]} : vector<8x128xf32> to vector<8x32xf32>
    %cst_17 = arith.constant 2.000000e+00 : f32
    %42 = vector.broadcast %cst_17 : f32 to vector<8x32xf32>
    %43 = arith.mulf %42, %41 : vector<8x32xf32>
    %cst_18 = arith.constant 1.000000e+00 : f32
    %44 = vector.broadcast %cst_18 : f32 to vector<8x32xf32>
    %45 = arith.subf %43, %44 : vector<8x32xf32>
    %46 = vector.extract_strided_slice %38 {offsets = [0, 96], sizes = [8, 32], strides = [1, 1]} : vector<8x128xf32> to vector<8x32xf32>
    %47 = arith.mulf %40, %27 : vector<8x32xf32>
    %48 = arith.mulf %39, %45 : vector<8x32xf32>
    %49 = arith.addf %47, %48 : vector<8x32xf32>
    %50 = math.tanh %49 : vector<8x32xf32>
    %51 = arith.mulf %46, %50 : vector<8x32xf32>
    %c8 = arith.constant 8 : index
    %c0_19 = arith.constant 0 : index
    %52 = vector.load %arg10[%c8, %c0_19] : memref<64x32xf32, #tpu.memory_space<vmem>>, vector<8x32xf32>
    tpu.vector_store %arg10[%c8, %c0_19], %51 {strides = array<i32>} : memref<64x32xf32, #tpu.memory_space<vmem>>, vector<8x32xf32>,
    %53 = vector.extract_strided_slice %6 {offsets = [16, 0], sizes = [8, 128], strides = [1, 1]} : vector<64x128xf32> to vector<8x128xf32>
    %cst_20 = arith.constant dense<0.000000e+00> : vector<8x128xf32>
    %54 = tpu.matmul %51, %2, %cst_20 {dimension_numbers = #tpu.dot_dimension_numbers<[1], [0], [0], [1], [0, 0, 1, 1], [], []>} : vector<8x32xf32>, vector<32x128xf32>, vector<8x128xf32> -> vector<8x128xf32>
    %55 = arith.addf %53, %54 : vector<8x128xf32>
    %56 = arith.negf %55 : vector<8x128xf32>
    %57 = math.exp %56 : vector<8x128xf32>
    %cst_21 = arith.constant 1.000000e+00 : f32
    %58 = vector.broadcast %cst_21 : f32 to vector<8x128xf32>
    %59 = arith.addf %58, %57 : vector<8x128xf32>
    %60 = arith.divf %58, %59 : vector<8x128xf32>
    %61 = vector.extract_strided_slice %60 {offsets = [0, 0], sizes = [8, 32], strides = [1, 1]} : vector<8x128xf32> to vector<8x32xf32>
    %62 = vector.extract_strided_slice %60 {offsets = [0, 32], sizes = [8, 32], strides = [1, 1]} : vector<8x128xf32> to vector<8x32xf32>
    %63 = vector.extract_strided_slice %60 {offsets = [0, 64], sizes = [8, 32], strides = [1, 1]} : vector<8x128xf32> to vector<8x32xf32>
    %cst_22 = arith.constant 2.000000e+00 : f32
    %64 = vector.broadcast %cst_22 : f32 to vector<8x32xf32>
    %65 = arith.mulf %64, %63 : vector<8x32xf32>
    %cst_23 = arith.constant 1.000000e+00 : f32
    %66 = vector.broadcast %cst_23 : f32 to vector<8x32xf32>
    %67 = arith.subf %65, %66 : vector<8x32xf32>
    %68 = vector.extract_strided_slice %60 {offsets = [0, 96], sizes = [8, 32], strides = [1, 1]} : vector<8x128xf32> to vector<8x32xf32>
    %69 = arith.mulf %62, %49 : vector<8x32xf32>
    %70 = arith.mulf %61, %67 : vector<8x32xf32>
    %71 = arith.addf %69, %70 : vector<8x32xf32>
    %72 = math.tanh %71 : vector<8x32xf32>
    %73 = arith.mulf %68, %72 : vector<8x32xf32>
    %c16 = arith.constant 16 : index
    %c0_24 = arith.constant 0 : index
    %74 = vector.load %arg10[%c16, %c0_24] : memref<64x32xf32, #tpu.memory_space<vmem>>, vector<8x32xf32>
    tpu.vector_store %arg10[%c16, %c0_24], %73 {strides = array<i32>} : memref<64x32xf32, #tpu.memory_space<vmem>>, vector<8x32xf32>,
    %75 = vector.extract_strided_slice %6 {offsets = [24, 0], sizes = [8, 128], strides = [1, 1]} : vector<64x128xf32> to vector<8x128xf32>
    %cst_25 = arith.constant dense<0.000000e+00> : vector<8x128xf32>
    %76 = tpu.matmul %73, %2, %cst_25 {dimension_numbers = #tpu.dot_dimension_numbers<[1], [0], [0], [1], [0, 0, 1, 1], [], []>} : vector<8x32xf32>, vector<32x128xf32>, vector<8x128xf32> -> vector<8x128xf32>
    %77 = arith.addf %75, %76 : vector<8x128xf32>
    %78 = arith.negf %77 : vector<8x128xf32>
    %79 = math.exp %78 : vector<8x128xf32>
    %cst_26 = arith.constant 1.000000e+00 : f32
    %80 = vector.broadcast %cst_26 : f32 to vector<8x128xf32>
    %81 = arith.addf %80, %79 : vector<8x128xf32>
    %82 = arith.divf %80, %81 : vector<8x128xf32>
    %83 = vector.extract_strided_slice %82 {offsets = [0, 0], sizes = [8, 32], strides = [1, 1]} : vector<8x128xf32> to vector<8x32xf32>
    %84 = vector.extract_strided_slice %82 {offsets = [0, 32], sizes = [8, 32], strides = [1, 1]} : vector<8x128xf32> to vector<8x32xf32>
    %85 = vector.extract_strided_slice %82 {offsets = [0, 64], sizes = [8, 32], strides = [1, 1]} : vector<8x128xf32> to vector<8x32xf32>
    %cst_27 = arith.constant 2.000000e+00 : f32
    %86 = vector.broadcast %cst_27 : f32 to vector<8x32xf32>
    %87 = arith.mulf %86, %85 : vector<8x32xf32>
    %cst_28 = arith.constant 1.000000e+00 : f32
    %88 = vector.broadcast %cst_28 : f32 to vector<8x32xf32>
    %89 = arith.subf %87, %88 : vector<8x32xf32>
    %90 = vector.extract_strided_slice %82 {offsets = [0, 96], sizes = [8, 32], strides = [1, 1]} : vector<8x128xf32> to vector<8x32xf32>
    %91 = arith.mulf %84, %71 : vector<8x32xf32>
    %92 = arith.mulf %83, %89 : vector<8x32xf32>
    %93 = arith.addf %91, %92 : vector<8x32xf32>
    %94 = math.tanh %93 : vector<8x32xf32>
    %95 = arith.mulf %90, %94 : vector<8x32xf32>
    %c24 = arith.constant 24 : index
    %c0_29 = arith.constant 0 : index
    %96 = vector.load %arg10[%c24, %c0_29] : memref<64x32xf32, #tpu.memory_space<vmem>>, vector<8x32xf32>
    tpu.vector_store %arg10[%c24, %c0_29], %95 {strides = array<i32>} : memref<64x32xf32, #tpu.memory_space<vmem>>, vector<8x32xf32>,
    %97 = vector.extract_strided_slice %6 {offsets = [32, 0], sizes = [8, 128], strides = [1, 1]} : vector<64x128xf32> to vector<8x128xf32>
    %cst_30 = arith.constant dense<0.000000e+00> : vector<8x128xf32>
    %98 = tpu.matmul %95, %2, %cst_30 {dimension_numbers = #tpu.dot_dimension_numbers<[1], [0], [0], [1], [0, 0, 1, 1], [], []>} : vector<8x32xf32>, vector<32x128xf32>, vector<8x128xf32> -> vector<8x128xf32>
    %99 = arith.addf %97, %98 : vector<8x128xf32>
    %100 = arith.negf %99 : vector<8x128xf32>
    %101 = math.exp %100 : vector<8x128xf32>
    %cst_31 = arith.constant 1.000000e+00 : f32
    %102 = vector.broadcast %cst_31 : f32 to vector<8x128xf32>
    %103 = arith.addf %102, %101 : vector<8x128xf32>
    %104 = arith.divf %102, %103 : vector<8x128xf32>
    %105 = vector.extract_strided_slice %104 {offsets = [0, 0], sizes = [8, 32], strides = [1, 1]} : vector<8x128xf32> to vector<8x32xf32>
    %106 = vector.extract_strided_slice %104 {offsets = [0, 32], sizes = [8, 32], strides = [1, 1]} : vector<8x128xf32> to vector<8x32xf32>
    %107 = vector.extract_strided_slice %104 {offsets = [0, 64], sizes = [8, 32], strides = [1, 1]} : vector<8x128xf32> to vector<8x32xf32>
    %cst_32 = arith.constant 2.000000e+00 : f32
    %108 = vector.broadcast %cst_32 : f32 to vector<8x32xf32>
    %109 = arith.mulf %108, %107 : vector<8x32xf32>
    %cst_33 = arith.constant 1.000000e+00 : f32
    %110 = vector.broadcast %cst_33 : f32 to vector<8x32xf32>
    %111 = arith.subf %109, %110 : vector<8x32xf32>
    %112 = vector.extract_strided_slice %104 {offsets = [0, 96], sizes = [8, 32], strides = [1, 1]} : vector<8x128xf32> to vector<8x32xf32>
    %113 = arith.mulf %106, %93 : vector<8x32xf32>
    %114 = arith.mulf %105, %111 : vector<8x32xf32>
    %115 = arith.addf %113, %114 : vector<8x32xf32>
    %116 = math.tanh %115 : vector<8x32xf32>
    %117 = arith.mulf %112, %116 : vector<8x32xf32>
    %c32 = arith.constant 32 : index
    %c0_34 = arith.constant 0 : index
    %118 = vector.load %arg10[%c32, %c0_34] : memref<64x32xf32, #tpu.memory_space<vmem>>, vector<8x32xf32>
    tpu.vector_store %arg10[%c32, %c0_34], %117 {strides = array<i32>} : memref<64x32xf32, #tpu.memory_space<vmem>>, vector<8x32xf32>,
    %119 = vector.extract_strided_slice %6 {offsets = [40, 0], sizes = [8, 128], strides = [1, 1]} : vector<64x128xf32> to vector<8x128xf32>
    %cst_35 = arith.constant dense<0.000000e+00> : vector<8x128xf32>
    %120 = tpu.matmul %117, %2, %cst_35 {dimension_numbers = #tpu.dot_dimension_numbers<[1], [0], [0], [1], [0, 0, 1, 1], [], []>} : vector<8x32xf32>, vector<32x128xf32>, vector<8x128xf32> -> vector<8x128xf32>
    %121 = arith.addf %119, %120 : vector<8x128xf32>
    %122 = arith.negf %121 : vector<8x128xf32>
    %123 = math.exp %122 : vector<8x128xf32>
    %cst_36 = arith.constant 1.000000e+00 : f32
    %124 = vector.broadcast %cst_36 : f32 to vector<8x128xf32>
    %125 = arith.addf %124, %123 : vector<8x128xf32>
    %126 = arith.divf %124, %125 : vector<8x128xf32>
    %127 = vector.extract_strided_slice %126 {offsets = [0, 0], sizes = [8, 32], strides = [1, 1]} : vector<8x128xf32> to vector<8x32xf32>
    %128 = vector.extract_strided_slice %126 {offsets = [0, 32], sizes = [8, 32], strides = [1, 1]} : vector<8x128xf32> to vector<8x32xf32>
    %129 = vector.extract_strided_slice %126 {offsets = [0, 64], sizes = [8, 32], strides = [1, 1]} : vector<8x128xf32> to vector<8x32xf32>
    %cst_37 = arith.constant 2.000000e+00 : f32
    %130 = vector.broadcast %cst_37 : f32 to vector<8x32xf32>
    %131 = arith.mulf %130, %129 : vector<8x32xf32>
    %cst_38 = arith.constant 1.000000e+00 : f32
    %132 = vector.broadcast %cst_38 : f32 to vector<8x32xf32>
    %133 = arith.subf %131, %132 : vector<8x32xf32>
    %134 = vector.extract_strided_slice %126 {offsets = [0, 96], sizes = [8, 32], strides = [1, 1]} : vector<8x128xf32> to vector<8x32xf32>
    %135 = arith.mulf %128, %115 : vector<8x32xf32>
    %136 = arith.mulf %127, %133 : vector<8x32xf32>
    %137 = arith.addf %135, %136 : vector<8x32xf32>
    %138 = math.tanh %137 : vector<8x32xf32>
    %139 = arith.mulf %134, %138 : vector<8x32xf32>
    %c40 = arith.constant 40 : index
    %c0_39 = arith.constant 0 : index
    %140 = vector.load %arg10[%c40, %c0_39] : memref<64x32xf32, #tpu.memory_space<vmem>>, vector<8x32xf32>
    tpu.vector_store %arg10[%c40, %c0_39], %139 {strides = array<i32>} : memref<64x32xf32, #tpu.memory_space<vmem>>, vector<8x32xf32>,
    %141 = vector.extract_strided_slice %6 {offsets = [48, 0], sizes = [8, 128], strides = [1, 1]} : vector<64x128xf32> to vector<8x128xf32>
    %cst_40 = arith.constant dense<0.000000e+00> : vector<8x128xf32>
    %142 = tpu.matmul %139, %2, %cst_40 {dimension_numbers = #tpu.dot_dimension_numbers<[1], [0], [0], [1], [0, 0, 1, 1], [], []>} : vector<8x32xf32>, vector<32x128xf32>, vector<8x128xf32> -> vector<8x128xf32>
    %143 = arith.addf %141, %142 : vector<8x128xf32>
    %144 = arith.negf %143 : vector<8x128xf32>
    %145 = math.exp %144 : vector<8x128xf32>
    %cst_41 = arith.constant 1.000000e+00 : f32
    %146 = vector.broadcast %cst_41 : f32 to vector<8x128xf32>
    %147 = arith.addf %146, %145 : vector<8x128xf32>
    %148 = arith.divf %146, %147 : vector<8x128xf32>
    %149 = vector.extract_strided_slice %148 {offsets = [0, 0], sizes = [8, 32], strides = [1, 1]} : vector<8x128xf32> to vector<8x32xf32>
    %150 = vector.extract_strided_slice %148 {offsets = [0, 32], sizes = [8, 32], strides = [1, 1]} : vector<8x128xf32> to vector<8x32xf32>
    %151 = vector.extract_strided_slice %148 {offsets = [0, 64], sizes = [8, 32], strides = [1, 1]} : vector<8x128xf32> to vector<8x32xf32>
    %cst_42 = arith.constant 2.000000e+00 : f32
    %152 = vector.broadcast %cst_42 : f32 to vector<8x32xf32>
    %153 = arith.mulf %152, %151 : vector<8x32xf32>
    %cst_43 = arith.constant 1.000000e+00 : f32
    %154 = vector.broadcast %cst_43 : f32 to vector<8x32xf32>
    %155 = arith.subf %153, %154 : vector<8x32xf32>
    %156 = vector.extract_strided_slice %148 {offsets = [0, 96], sizes = [8, 32], strides = [1, 1]} : vector<8x128xf32> to vector<8x32xf32>
    %157 = arith.mulf %150, %137 : vector<8x32xf32>
    %158 = arith.mulf %149, %155 : vector<8x32xf32>
    %159 = arith.addf %157, %158 : vector<8x32xf32>
    %160 = math.tanh %159 : vector<8x32xf32>
    %161 = arith.mulf %156, %160 : vector<8x32xf32>
    %c48 = arith.constant 48 : index
    %c0_44 = arith.constant 0 : index
    %162 = vector.load %arg10[%c48, %c0_44] : memref<64x32xf32, #tpu.memory_space<vmem>>, vector<8x32xf32>
    tpu.vector_store %arg10[%c48, %c0_44], %161 {strides = array<i32>} : memref<64x32xf32, #tpu.memory_space<vmem>>, vector<8x32xf32>,
    %163 = vector.extract_strided_slice %6 {offsets = [56, 0], sizes = [8, 128], strides = [1, 1]} : vector<64x128xf32> to vector<8x128xf32>
    %cst_45 = arith.constant dense<0.000000e+00> : vector<8x128xf32>
    %164 = tpu.matmul %161, %2, %cst_45 {dimension_numbers = #tpu.dot_dimension_numbers<[1], [0], [0], [1], [0, 0, 1, 1], [], []>} : vector<8x32xf32>, vector<32x128xf32>, vector<8x128xf32> -> vector<8x128xf32>
    %165 = arith.addf %163, %164 : vector<8x128xf32>
    %166 = arith.negf %165 : vector<8x128xf32>
    %167 = math.exp %166 : vector<8x128xf32>
    %cst_46 = arith.constant 1.000000e+00 : f32
    %168 = vector.broadcast %cst_46 : f32 to vector<8x128xf32>
    %169 = arith.addf %168, %167 : vector<8x128xf32>
    %170 = arith.divf %168, %169 : vector<8x128xf32>
    %171 = vector.extract_strided_slice %170 {offsets = [0, 0], sizes = [8, 32], strides = [1, 1]} : vector<8x128xf32> to vector<8x32xf32>
    %172 = vector.extract_strided_slice %170 {offsets = [0, 32], sizes = [8, 32], strides = [1, 1]} : vector<8x128xf32> to vector<8x32xf32>
    %173 = vector.extract_strided_slice %170 {offsets = [0, 64], sizes = [8, 32], strides = [1, 1]} : vector<8x128xf32> to vector<8x32xf32>
    %cst_47 = arith.constant 2.000000e+00 : f32
    %174 = vector.broadcast %cst_47 : f32 to vector<8x32xf32>
    %175 = arith.mulf %174, %173 : vector<8x32xf32>
    %cst_48 = arith.constant 1.000000e+00 : f32
    %176 = vector.broadcast %cst_48 : f32 to vector<8x32xf32>
    %177 = arith.subf %175, %176 : vector<8x32xf32>
    %178 = vector.extract_strided_slice %170 {offsets = [0, 96], sizes = [8, 32], strides = [1, 1]} : vector<8x128xf32> to vector<8x32xf32>
    %179 = arith.mulf %172, %159 : vector<8x32xf32>
    %180 = arith.mulf %171, %177 : vector<8x32xf32>
    %181 = arith.addf %179, %180 : vector<8x32xf32>
    %182 = math.tanh %181 : vector<8x32xf32>
    %183 = arith.mulf %178, %182 : vector<8x32xf32>
    %c56 = arith.constant 56 : index
    %c0_49 = arith.constant 0 : index
    %184 = vector.load %arg10[%c56, %c0_49] : memref<64x32xf32, #tpu.memory_space<vmem>>, vector<8x32xf32>
    tpu.vector_store %arg10[%c56, %c0_49], %183 {strides = array<i32>} : memref<64x32xf32, #tpu.memory_space<vmem>>, vector<8x32xf32>,
    %c0_50 = arith.constant 0 : index
    %c0_51 = arith.constant 0 : index
    %185 = vector.load %arg10[%c0_50, %c0_51] : memref<64x32xf32, #tpu.memory_space<vmem>>, vector<64x32xf32>
    %c0_52 = arith.constant 0 : index
    %c0_53 = arith.constant 0 : index
    %186 = vector.load %arg4[%c0_52, %c0_53] : memref<32x128xf32, #tpu.memory_space<vmem>>, vector<32x128xf32>
    %c0_54 = arith.constant 0 : index
    %c0_55 = arith.constant 0 : index
    %187 = vector.load %arg5[%c0_54, %c0_55] : memref<32x128xf32, #tpu.memory_space<vmem>>, vector<32x128xf32>
    %c0_56 = arith.constant 0 : index
    %c0_57 = arith.constant 0 : index
    %188 = vector.load %arg6[%c0_56, %c0_57] : memref<1x128xf32, #tpu.memory_space<vmem>>, vector<1x128xf32>
    %cst_58 = arith.constant dense<0.000000e+00> : vector<64x128xf32>
    %189 = tpu.matmul %185, %186, %cst_58 {dimension_numbers = #tpu.dot_dimension_numbers<[1], [0], [0], [1], [0, 0, 1, 1], [], []>} : vector<64x32xf32>, vector<32x128xf32>, vector<64x128xf32> -> vector<64x128xf32>
    %190 = vector.broadcast %188 : vector<1x128xf32> to vector<64x128xf32>
    %191 = arith.addf %189, %190 : vector<64x128xf32>
    %cst_59 = arith.constant 0.000000e+00 : f32
    %192 = vector.broadcast %cst_59 : f32 to vector<8x32xf32>
    %cst_60 = arith.constant 0.000000e+00 : f32
    %193 = vector.broadcast %cst_60 : f32 to vector<8x32xf32>
    %194 = vector.extract_strided_slice %191 {offsets = [0, 0], sizes = [8, 128], strides = [1, 1]} : vector<64x128xf32> to vector<8x128xf32>
    %cst_61 = arith.constant dense<0.000000e+00> : vector<8x128xf32>
    %195 = tpu.matmul %192, %187, %cst_61 {dimension_numbers = #tpu.dot_dimension_numbers<[1], [0], [0], [1], [0, 0, 1, 1], [], []>} : vector<8x32xf32>, vector<32x128xf32>, vector<8x128xf32> -> vector<8x128xf32>
    %196 = arith.addf %194, %195 : vector<8x128xf32>
    %197 = arith.negf %196 : vector<8x128xf32>
    %198 = math.exp %197 : vector<8x128xf32>
    %cst_62 = arith.constant 1.000000e+00 : f32
    %199 = vector.broadcast %cst_62 : f32 to vector<8x128xf32>
    %200 = arith.addf %199, %198 : vector<8x128xf32>
    %201 = arith.divf %199, %200 : vector<8x128xf32>
    %202 = vector.extract_strided_slice %201 {offsets = [0, 0], sizes = [8, 32], strides = [1, 1]} : vector<8x128xf32> to vector<8x32xf32>
    %203 = vector.extract_strided_slice %201 {offsets = [0, 32], sizes = [8, 32], strides = [1, 1]} : vector<8x128xf32> to vector<8x32xf32>
    %204 = vector.extract_strided_slice %201 {offsets = [0, 64], sizes = [8, 32], strides = [1, 1]} : vector<8x128xf32> to vector<8x32xf32>
    %cst_63 = arith.constant 2.000000e+00 : f32
    %205 = vector.broadcast %cst_63 : f32 to vector<8x32xf32>
    %206 = arith.mulf %205, %204 : vector<8x32xf32>
    %cst_64 = arith.constant 1.000000e+00 : f32
    %207 = vector.broadcast %cst_64 : f32 to vector<8x32xf32>
    %208 = arith.subf %206, %207 : vector<8x32xf32>
    %209 = vector.extract_strided_slice %201 {offsets = [0, 96], sizes = [8, 32], strides = [1, 1]} : vector<8x128xf32> to vector<8x32xf32>
    %210 = arith.mulf %203, %193 : vector<8x32xf32>
    %211 = arith.mulf %202, %208 : vector<8x32xf32>
    %212 = arith.addf %210, %211 : vector<8x32xf32>
    %213 = math.tanh %212 : vector<8x32xf32>
    %214 = arith.mulf %209, %213 : vector<8x32xf32>
    %215 = vector.extract_strided_slice %191 {offsets = [8, 0], sizes = [8, 128], strides = [1, 1]} : vector<64x128xf32> to vector<8x128xf32>
    %cst_65 = arith.constant dense<0.000000e+00> : vector<8x128xf32>
    %216 = tpu.matmul %214, %187, %cst_65 {dimension_numbers = #tpu.dot_dimension_numbers<[1], [0], [0], [1], [0, 0, 1, 1], [], []>} : vector<8x32xf32>, vector<32x128xf32>, vector<8x128xf32> -> vector<8x128xf32>
    %217 = arith.addf %215, %216 : vector<8x128xf32>
    %218 = arith.negf %217 : vector<8x128xf32>
    %219 = math.exp %218 : vector<8x128xf32>
    %cst_66 = arith.constant 1.000000e+00 : f32
    %220 = vector.broadcast %cst_66 : f32 to vector<8x128xf32>
    %221 = arith.addf %220, %219 : vector<8x128xf32>
    %222 = arith.divf %220, %221 : vector<8x128xf32>
    %223 = vector.extract_strided_slice %222 {offsets = [0, 0], sizes = [8, 32], strides = [1, 1]} : vector<8x128xf32> to vector<8x32xf32>
    %224 = vector.extract_strided_slice %222 {offsets = [0, 32], sizes = [8, 32], strides = [1, 1]} : vector<8x128xf32> to vector<8x32xf32>
    %225 = vector.extract_strided_slice %222 {offsets = [0, 64], sizes = [8, 32], strides = [1, 1]} : vector<8x128xf32> to vector<8x32xf32>
    %cst_67 = arith.constant 2.000000e+00 : f32
    %226 = vector.broadcast %cst_67 : f32 to vector<8x32xf32>
    %227 = arith.mulf %226, %225 : vector<8x32xf32>
    %cst_68 = arith.constant 1.000000e+00 : f32
    %228 = vector.broadcast %cst_68 : f32 to vector<8x32xf32>
    %229 = arith.subf %227, %228 : vector<8x32xf32>
    %230 = vector.extract_strided_slice %222 {offsets = [0, 96], sizes = [8, 32], strides = [1, 1]} : vector<8x128xf32> to vector<8x32xf32>
    %231 = arith.mulf %224, %212 : vector<8x32xf32>
    %232 = arith.mulf %223, %229 : vector<8x32xf32>
    %233 = arith.addf %231, %232 : vector<8x32xf32>
    %234 = math.tanh %233 : vector<8x32xf32>
    %235 = arith.mulf %230, %234 : vector<8x32xf32>
    %236 = vector.extract_strided_slice %191 {offsets = [16, 0], sizes = [8, 128], strides = [1, 1]} : vector<64x128xf32> to vector<8x128xf32>
    %cst_69 = arith.constant dense<0.000000e+00> : vector<8x128xf32>
    %237 = tpu.matmul %235, %187, %cst_69 {dimension_numbers = #tpu.dot_dimension_numbers<[1], [0], [0], [1], [0, 0, 1, 1], [], []>} : vector<8x32xf32>, vector<32x128xf32>, vector<8x128xf32> -> vector<8x128xf32>
    %238 = arith.addf %236, %237 : vector<8x128xf32>
    %239 = arith.negf %238 : vector<8x128xf32>
    %240 = math.exp %239 : vector<8x128xf32>
    %cst_70 = arith.constant 1.000000e+00 : f32
    %241 = vector.broadcast %cst_70 : f32 to vector<8x128xf32>
    %242 = arith.addf %241, %240 : vector<8x128xf32>
    %243 = arith.divf %241, %242 : vector<8x128xf32>
    %244 = vector.extract_strided_slice %243 {offsets = [0, 0], sizes = [8, 32], strides = [1, 1]} : vector<8x128xf32> to vector<8x32xf32>
    %245 = vector.extract_strided_slice %243 {offsets = [0, 32], sizes = [8, 32], strides = [1, 1]} : vector<8x128xf32> to vector<8x32xf32>
    %246 = vector.extract_strided_slice %243 {offsets = [0, 64], sizes = [8, 32], strides = [1, 1]} : vector<8x128xf32> to vector<8x32xf32>
    %cst_71 = arith.constant 2.000000e+00 : f32
    %247 = vector.broadcast %cst_71 : f32 to vector<8x32xf32>
    %248 = arith.mulf %247, %246 : vector<8x32xf32>
    %cst_72 = arith.constant 1.000000e+00 : f32
    %249 = vector.broadcast %cst_72 : f32 to vector<8x32xf32>
    %250 = arith.subf %248, %249 : vector<8x32xf32>
    %251 = vector.extract_strided_slice %243 {offsets = [0, 96], sizes = [8, 32], strides = [1, 1]} : vector<8x128xf32> to vector<8x32xf32>
    %252 = arith.mulf %245, %233 : vector<8x32xf32>
    %253 = arith.mulf %244, %250 : vector<8x32xf32>
    %254 = arith.addf %252, %253 : vector<8x32xf32>
    %255 = math.tanh %254 : vector<8x32xf32>
    %256 = arith.mulf %251, %255 : vector<8x32xf32>
    %257 = vector.extract_strided_slice %191 {offsets = [24, 0], sizes = [8, 128], strides = [1, 1]} : vector<64x128xf32> to vector<8x128xf32>
    %cst_73 = arith.constant dense<0.000000e+00> : vector<8x128xf32>
    %258 = tpu.matmul %256, %187, %cst_73 {dimension_numbers = #tpu.dot_dimension_numbers<[1], [0], [0], [1], [0, 0, 1, 1], [], []>} : vector<8x32xf32>, vector<32x128xf32>, vector<8x128xf32> -> vector<8x128xf32>
    %259 = arith.addf %257, %258 : vector<8x128xf32>
    %260 = arith.negf %259 : vector<8x128xf32>
    %261 = math.exp %260 : vector<8x128xf32>
    %cst_74 = arith.constant 1.000000e+00 : f32
    %262 = vector.broadcast %cst_74 : f32 to vector<8x128xf32>
    %263 = arith.addf %262, %261 : vector<8x128xf32>
    %264 = arith.divf %262, %263 : vector<8x128xf32>
    %265 = vector.extract_strided_slice %264 {offsets = [0, 0], sizes = [8, 32], strides = [1, 1]} : vector<8x128xf32> to vector<8x32xf32>
    %266 = vector.extract_strided_slice %264 {offsets = [0, 32], sizes = [8, 32], strides = [1, 1]} : vector<8x128xf32> to vector<8x32xf32>
    %267 = vector.extract_strided_slice %264 {offsets = [0, 64], sizes = [8, 32], strides = [1, 1]} : vector<8x128xf32> to vector<8x32xf32>
    %cst_75 = arith.constant 2.000000e+00 : f32
    %268 = vector.broadcast %cst_75 : f32 to vector<8x32xf32>
    %269 = arith.mulf %268, %267 : vector<8x32xf32>
    %cst_76 = arith.constant 1.000000e+00 : f32
    %270 = vector.broadcast %cst_76 : f32 to vector<8x32xf32>
    %271 = arith.subf %269, %270 : vector<8x32xf32>
    %272 = vector.extract_strided_slice %264 {offsets = [0, 96], sizes = [8, 32], strides = [1, 1]} : vector<8x128xf32> to vector<8x32xf32>
    %273 = arith.mulf %266, %254 : vector<8x32xf32>
    %274 = arith.mulf %265, %271 : vector<8x32xf32>
    %275 = arith.addf %273, %274 : vector<8x32xf32>
    %276 = math.tanh %275 : vector<8x32xf32>
    %277 = arith.mulf %272, %276 : vector<8x32xf32>
    %278 = vector.extract_strided_slice %191 {offsets = [32, 0], sizes = [8, 128], strides = [1, 1]} : vector<64x128xf32> to vector<8x128xf32>
    %cst_77 = arith.constant dense<0.000000e+00> : vector<8x128xf32>
    %279 = tpu.matmul %277, %187, %cst_77 {dimension_numbers = #tpu.dot_dimension_numbers<[1], [0], [0], [1], [0, 0, 1, 1], [], []>} : vector<8x32xf32>, vector<32x128xf32>, vector<8x128xf32> -> vector<8x128xf32>
    %280 = arith.addf %278, %279 : vector<8x128xf32>
    %281 = arith.negf %280 : vector<8x128xf32>
    %282 = math.exp %281 : vector<8x128xf32>
    %cst_78 = arith.constant 1.000000e+00 : f32
    %283 = vector.broadcast %cst_78 : f32 to vector<8x128xf32>
    %284 = arith.addf %283, %282 : vector<8x128xf32>
    %285 = arith.divf %283, %284 : vector<8x128xf32>
    %286 = vector.extract_strided_slice %285 {offsets = [0, 0], sizes = [8, 32], strides = [1, 1]} : vector<8x128xf32> to vector<8x32xf32>
    %287 = vector.extract_strided_slice %285 {offsets = [0, 32], sizes = [8, 32], strides = [1, 1]} : vector<8x128xf32> to vector<8x32xf32>
    %288 = vector.extract_strided_slice %285 {offsets = [0, 64], sizes = [8, 32], strides = [1, 1]} : vector<8x128xf32> to vector<8x32xf32>
    %cst_79 = arith.constant 2.000000e+00 : f32
    %289 = vector.broadcast %cst_79 : f32 to vector<8x32xf32>
    %290 = arith.mulf %289, %288 : vector<8x32xf32>
    %cst_80 = arith.constant 1.000000e+00 : f32
    %291 = vector.broadcast %cst_80 : f32 to vector<8x32xf32>
    %292 = arith.subf %290, %291 : vector<8x32xf32>
    %293 = vector.extract_strided_slice %285 {offsets = [0, 96], sizes = [8, 32], strides = [1, 1]} : vector<8x128xf32> to vector<8x32xf32>
    %294 = arith.mulf %287, %275 : vector<8x32xf32>
    %295 = arith.mulf %286, %292 : vector<8x32xf32>
    %296 = arith.addf %294, %295 : vector<8x32xf32>
    %297 = math.tanh %296 : vector<8x32xf32>
    %298 = arith.mulf %293, %297 : vector<8x32xf32>
    %299 = vector.extract_strided_slice %191 {offsets = [40, 0], sizes = [8, 128], strides = [1, 1]} : vector<64x128xf32> to vector<8x128xf32>
    %cst_81 = arith.constant dense<0.000000e+00> : vector<8x128xf32>
    %300 = tpu.matmul %298, %187, %cst_81 {dimension_numbers = #tpu.dot_dimension_numbers<[1], [0], [0], [1], [0, 0, 1, 1], [], []>} : vector<8x32xf32>, vector<32x128xf32>, vector<8x128xf32> -> vector<8x128xf32>
    %301 = arith.addf %299, %300 : vector<8x128xf32>
    %302 = arith.negf %301 : vector<8x128xf32>
    %303 = math.exp %302 : vector<8x128xf32>
    %cst_82 = arith.constant 1.000000e+00 : f32
    %304 = vector.broadcast %cst_82 : f32 to vector<8x128xf32>
    %305 = arith.addf %304, %303 : vector<8x128xf32>
    %306 = arith.divf %304, %305 : vector<8x128xf32>
    %307 = vector.extract_strided_slice %306 {offsets = [0, 0], sizes = [8, 32], strides = [1, 1]} : vector<8x128xf32> to vector<8x32xf32>
    %308 = vector.extract_strided_slice %306 {offsets = [0, 32], sizes = [8, 32], strides = [1, 1]} : vector<8x128xf32> to vector<8x32xf32>
    %309 = vector.extract_strided_slice %306 {offsets = [0, 64], sizes = [8, 32], strides = [1, 1]} : vector<8x128xf32> to vector<8x32xf32>
    %cst_83 = arith.constant 2.000000e+00 : f32
    %310 = vector.broadcast %cst_83 : f32 to vector<8x32xf32>
    %311 = arith.mulf %310, %309 : vector<8x32xf32>
    %cst_84 = arith.constant 1.000000e+00 : f32
    %312 = vector.broadcast %cst_84 : f32 to vector<8x32xf32>
    %313 = arith.subf %311, %312 : vector<8x32xf32>
    %314 = vector.extract_strided_slice %306 {offsets = [0, 96], sizes = [8, 32], strides = [1, 1]} : vector<8x128xf32> to vector<8x32xf32>
    %315 = arith.mulf %308, %296 : vector<8x32xf32>
    %316 = arith.mulf %307, %313 : vector<8x32xf32>
    %317 = arith.addf %315, %316 : vector<8x32xf32>
    %318 = math.tanh %317 : vector<8x32xf32>
    %319 = arith.mulf %314, %318 : vector<8x32xf32>
    %320 = vector.extract_strided_slice %191 {offsets = [48, 0], sizes = [8, 128], strides = [1, 1]} : vector<64x128xf32> to vector<8x128xf32>
    %cst_85 = arith.constant dense<0.000000e+00> : vector<8x128xf32>
    %321 = tpu.matmul %319, %187, %cst_85 {dimension_numbers = #tpu.dot_dimension_numbers<[1], [0], [0], [1], [0, 0, 1, 1], [], []>} : vector<8x32xf32>, vector<32x128xf32>, vector<8x128xf32> -> vector<8x128xf32>
    %322 = arith.addf %320, %321 : vector<8x128xf32>
    %323 = arith.negf %322 : vector<8x128xf32>
    %324 = math.exp %323 : vector<8x128xf32>
    %cst_86 = arith.constant 1.000000e+00 : f32
    %325 = vector.broadcast %cst_86 : f32 to vector<8x128xf32>
    %326 = arith.addf %325, %324 : vector<8x128xf32>
    %327 = arith.divf %325, %326 : vector<8x128xf32>
    %328 = vector.extract_strided_slice %327 {offsets = [0, 0], sizes = [8, 32], strides = [1, 1]} : vector<8x128xf32> to vector<8x32xf32>
    %329 = vector.extract_strided_slice %327 {offsets = [0, 32], sizes = [8, 32], strides = [1, 1]} : vector<8x128xf32> to vector<8x32xf32>
    %330 = vector.extract_strided_slice %327 {offsets = [0, 64], sizes = [8, 32], strides = [1, 1]} : vector<8x128xf32> to vector<8x32xf32>
    %cst_87 = arith.constant 2.000000e+00 : f32
    %331 = vector.broadcast %cst_87 : f32 to vector<8x32xf32>
    %332 = arith.mulf %331, %330 : vector<8x32xf32>
    %cst_88 = arith.constant 1.000000e+00 : f32
    %333 = vector.broadcast %cst_88 : f32 to vector<8x32xf32>
    %334 = arith.subf %332, %333 : vector<8x32xf32>
    %335 = vector.extract_strided_slice %327 {offsets = [0, 96], sizes = [8, 32], strides = [1, 1]} : vector<8x128xf32> to vector<8x32xf32>
    %336 = arith.mulf %329, %317 : vector<8x32xf32>
    %337 = arith.mulf %328, %334 : vector<8x32xf32>
    %338 = arith.addf %336, %337 : vector<8x32xf32>
    %339 = math.tanh %338 : vector<8x32xf32>
    %340 = arith.mulf %335, %339 : vector<8x32xf32>
    %341 = vector.extract_strided_slice %191 {offsets = [56, 0], sizes = [8, 128], strides = [1, 1]} : vector<64x128xf32> to vector<8x128xf32>
    %cst_89 = arith.constant dense<0.000000e+00> : vector<8x128xf32>
    %342 = tpu.matmul %340, %187, %cst_89 {dimension_numbers = #tpu.dot_dimension_numbers<[1], [0], [0], [1], [0, 0, 1, 1], [], []>} : vector<8x32xf32>, vector<32x128xf32>, vector<8x128xf32> -> vector<8x128xf32>
    %343 = arith.addf %341, %342 : vector<8x128xf32>
    %344 = arith.negf %343 : vector<8x128xf32>
    %345 = math.exp %344 : vector<8x128xf32>
    %cst_90 = arith.constant 1.000000e+00 : f32
    %346 = vector.broadcast %cst_90 : f32 to vector<8x128xf32>
    %347 = arith.addf %346, %345 : vector<8x128xf32>
    %348 = arith.divf %346, %347 : vector<8x128xf32>
    %349 = vector.extract_strided_slice %348 {offsets = [0, 0], sizes = [8, 32], strides = [1, 1]} : vector<8x128xf32> to vector<8x32xf32>
    %350 = vector.extract_strided_slice %348 {offsets = [0, 32], sizes = [8, 32], strides = [1, 1]} : vector<8x128xf32> to vector<8x32xf32>
    %351 = vector.extract_strided_slice %348 {offsets = [0, 64], sizes = [8, 32], strides = [1, 1]} : vector<8x128xf32> to vector<8x32xf32>
    %cst_91 = arith.constant 2.000000e+00 : f32
    %352 = vector.broadcast %cst_91 : f32 to vector<8x32xf32>
    %353 = arith.mulf %352, %351 : vector<8x32xf32>
    %cst_92 = arith.constant 1.000000e+00 : f32
    %354 = vector.broadcast %cst_92 : f32 to vector<8x32xf32>
    %355 = arith.subf %353, %354 : vector<8x32xf32>
    %356 = vector.extract_strided_slice %348 {offsets = [0, 96], sizes = [8, 32], strides = [1, 1]} : vector<8x128xf32> to vector<8x32xf32>
    %357 = arith.mulf %350, %338 : vector<8x32xf32>
    %358 = arith.mulf %349, %355 : vector<8x32xf32>
    %359 = arith.addf %357, %358 : vector<8x32xf32>
    %360 = math.tanh %359 : vector<8x32xf32>
    %361 = arith.mulf %356, %360 : vector<8x32xf32>
    %c0_93 = arith.constant 0 : index
    %c0_94 = arith.constant 0 : index
    %362 = vector.load %arg7[%c0_93, %c0_94] : memref<32x128xf32, #tpu.memory_space<vmem>>, vector<32x128xf32>
    %cst_95 = arith.constant dense<0.000000e+00> : vector<8x128xf32>
    %363 = tpu.matmul %361, %362, %cst_95 {dimension_numbers = #tpu.dot_dimension_numbers<[1], [0], [0], [1], [0, 0, 1, 1], [], []>} : vector<8x32xf32>, vector<32x128xf32>, vector<8x128xf32> -> vector<8x128xf32>
    %c0_96 = arith.constant 0 : index
    %c0_97 = arith.constant 0 : index
    %364 = vector.load %arg8[%c0_96, %c0_97] : memref<1x128xf32, #tpu.memory_space<vmem>>, vector<1x128xf32>
    %365 = vector.broadcast %364 : vector<1x128xf32> to vector<8x128xf32>
    %366 = arith.addf %363, %365 : vector<8x128xf32>
    %367 = arith.negf %366 : vector<8x128xf32>
    %368 = math.exp %367 : vector<8x128xf32>
    %cst_98 = arith.constant 1.000000e+00 : f32
    %369 = vector.broadcast %cst_98 : f32 to vector<8x128xf32>
    %370 = arith.addf %369, %368 : vector<8x128xf32>
    %371 = arith.divf %369, %370 : vector<8x128xf32>
    %c0_99 = arith.constant 0 : index
    %c0_100 = arith.constant 0 : index
    %372 = vector.load %arg9[%c0_99, %c0_100] : memref<8x128xf32, #tpu.memory_space<vmem>>, vector<8x128xf32>
    tpu.vector_store %arg9[%c0_99, %c0_100], %371 {strides = array<i32>} : memref<8x128xf32, #tpu.memory_space<vmem>>, vector<8x128xf32>,
    return
  }
}

</mosaic_0001>

<llo_original>
// kernel: attack_detection_forward.2
$region0: #{attack_detection_forward.2}
  #allocation0 [shape = 'u32[]', space=smem, size = 0x4, offset = 0x4, fixed_abs, tag = 'smem constant byte address 0x4 - core index']
  #allocation1 [shape = 'u32[72,128]{1,0:T(1,128)}', space=vmem, size = 0x9000, scoped, tag = 'internal scratch']
  #allocation2 [shape = 'f32[64,32]{1,0:T(8,128)}', space=vmem, size = 0x8000, scoped, tag = 'scratch operand']
  #allocation3 [shape = 'u32[2048]{0}', space=vmem, size = 0x2000, scoped, tag = 'scoped memory for attack_detection_forward.2']
  #allocation4 [shape = 'u32[2048]{0}', space=vmem, size = 0x2000, scoped, tag = 'scoped memory for attack_detection_forward.2']
  #allocation5 [shape = 'u32[2048]{0}', space=vmem, size = 0x2000, scoped, tag = 'scoped memory for attack_detection_forward.2']
  #allocation6 [shape = 'u32[2048]{0}', space=vmem, size = 0x2000, scoped, tag = 'scoped memory for attack_detection_forward.2']
  #allocation7 [shape = 'u32[2048]{0}', space=vmem, size = 0x2000, scoped, tag = 'scoped memory for attack_detection_forward.2']
  %s0 = inlined_call_operand.hbm [shape: f32[16,128], index: 0, kind: input, shape index: {}]
  %s1 = inlined_call_operand.vmem [shape: f32[32,128], index: 1, kind: input, shape index: {}]
  %s2 = inlined_call_operand.vmem [shape: f32[1,128], index: 2, kind: input, shape index: {}]
  %s3 = inlined_call_operand.hbm [shape: f32[32,128], index: 3, kind: input, shape index: {}]
  %s4 = inlined_call_operand.hbm [shape: f32[32,128], index: 4, kind: input, shape index: {}]
  %s5 = inlined_call_operand.vmem [shape: f32[1,128], index: 5, kind: input, shape index: {}]
  %s6 = inlined_call_operand.hbm [shape: f32[32,128], index: 6, kind: input, shape index: {}]
  %s7 = inlined_call_operand.vmem [shape: f32[1,128], index: 7, kind: input, shape index: {}]
  %s8 = inlined_call_operand.vmem [shape: f32[8,2,16], index: 8, kind: input, shape index: {}]
  %s9 = inlined_call_operand.<no memory space> [shape: f32[], index: 9, kind: input, shape index: {}]
  %s10 = inlined_call_operand.vmem [shape: f32[8,128], index: 10, kind: output, shape index: {}]
  %s11 = sld [smem:[#allocation0]]
  $region62: #{attack_detection_forward.2} parent=0
    _
  %s13 = ssub.s32 1, %s11
  %s14 = scalar_select 0, %s13, %s11
  %v15 = vstv %s9
  $region1: #{attack_detection_forward.2} parent=0
    #allocation8 [shape = 'u8[8192]{0}', space=vmem, size = 0x2000, scoped, tag = 'input window, operand 1, single buffered']
    #allocation9 [shape = 's32[1]{0}', space=sflag, size = 0x4, scoped, tag = 'scoped memory for attack_detection_forward.2']
    #allocation10 [shape = 'u8[16384]{0}', space=vmem, size = 0x4000, scoped, tag = 'input window, operand 4, single buffered']
    #allocation11 [shape = 's32[1]{0}', space=sflag, size = 0x4, scoped, tag = 'scoped memory for attack_detection_forward.2']
    #allocation12 [shape = 'u8[16384]{0}', space=vmem, size = 0x4000, scoped, tag = 'input window, operand 5, single buffered']
    #allocation13 [shape = 'u8[16384]{0}', space=vmem, size = 0x4000, scoped, tag = 'input window, operand 7, single buffered']
    #allocation14 [shape = 's32[1]{0}', space=sflag, size = 0x4, scoped, tag = 'scoped memory for attack_detection_forward.2']
    #allocation15 [shape = 'u8[32768]{0}', space=vmem, size = 0x8000, dematerialized = true, scoped, tag = 'FusionAdapter Buffer %pad_bitcast_fusion.1 = f32[64,16]{1,0:T(8,128)} fusion(%param_8.1, %param_9), kind=kLoop, calls=%fused_computation.clone.clone, metadata={op_name="jit(attack_detection_forward)/reshape" stack_frame_id=9}']
    %16 = vsyncpa [#allocation9], 0
    %17 = vsyncpa [#allocation11], 0
    %18 = vsyncpa [#allocation14], 0
    // Predicated region
    $region2: #{attack_detection_forward.2} parent=1 // pred_check
      _
    $region3: #{attack_detection_forward.2} parent=1 // pred_check_branch
      %20 = sbr.rel (0) target = $region5
    $region4: #{attack_detection_forward.2} parent=1 // pred_region
      _
    $region5: #{attack_detection_forward.2} parent=1 // pred_fallthru
      _
    // Predicated region
    $region6: #{attack_detection_forward.2} parent=1 // pred_check
      _
    $region7: #{attack_detection_forward.2} parent=1 // pred_check_branch
      %22 = sbr.rel (0) target = $region9
    $region8: #{attack_detection_forward.2} parent=1 // pred_region
      %24 = vsyncadd [#allocation9], 0
      %s25 = sshll.u32 %s0, 4
      %s26 = int_to_ptr.hbm [resolvable:$true] %s25
      %s27 = sshll.u32 [#allocation8], 4
      %s28 = int_to_ptr.vmem [resolvable:$true] %s27
      %33 = dma.hbm_to_vmem [thread:$0]  %s26, 256, %s28, [#allocation9], 128, 128, 8
    $region9: #{attack_detection_forward.2} parent=1 // pred_fallthru
      _
    // Predicated region
    $region10: #{attack_detection_forward.2} parent=1 // pred_check
      _
    $region11: #{attack_detection_forward.2} parent=1 // pred_check_branch
      %35 = sbr.rel (0) target = $region13
    $region12: #{attack_detection_forward.2} parent=1 // pred_region
      _
    $region13: #{attack_detection_forward.2} parent=1 // pred_fallthru
      _
    // Predicated region
    $region14: #{attack_detection_forward.2} parent=1 // pred_check
      _
    $region15: #{attack_detection_forward.2} parent=1 // pred_check_branch
      %37 = sbr.rel (0) target = $region17
    $region16: #{attack_detection_forward.2} parent=1 // pred_region
      _
    $region17: #{attack_detection_forward.2} parent=1 // pred_fallthru
      _
    // Predicated region
    $region18: #{attack_detection_forward.2} parent=1 // pred_check
      _
    $region19: #{attack_detection_forward.2} parent=1 // pred_check_branch
      %39 = sbr.rel (0) target = $region21
    $region20: #{attack_detection_forward.2} parent=1 // pred_region
      %41 = vsyncadd [#allocation11], 0
      %s42 = sshll.u32 %s3, 4
      %s43 = int_to_ptr.hbm [resolvable:$true] %s42
      %s44 = sshll.u32 [#allocation10], 4
      %s45 = int_to_ptr.vmem [resolvable:$true] %s44
      %50 = dma.hbm_to_vmem [thread:$0]  %s43, 512, %s45, [#allocation11], 128, 128, 8
    $region21: #{attack_detection_forward.2} parent=1 // pred_fallthru
      _
    // Predicated region
    $region22: #{attack_detection_forward.2} parent=1 // pred_check
      _
    $region23: #{attack_detection_forward.2} parent=1 // pred_check_branch
      %52 = sbr.rel (0) target = $region25
    $region24: #{attack_detection_forward.2} parent=1 // pred_region
      %54 = vsyncadd [#allocation11], 0
      %s55 = sshll.u32 %s4, 4
      %s56 = int_to_ptr.hbm [resolvable:$true] %s55
      %s57 = sshll.u32 [#allocation12], 4
      %s58 = int_to_ptr.vmem [resolvable:$true] %s57
      %63 = dma.hbm_to_vmem [thread:$0]  %s56, 512, %s58, [#allocation11], 128, 128, 8
    $region25: #{attack_detection_forward.2} parent=1 // pred_fallthru
      _
    // Predicated region
    $region26: #{attack_detection_forward.2} parent=1 // pred_check
      _
    $region27: #{attack_detection_forward.2} parent=1 // pred_check_branch
      %65 = sbr.rel (0) target = $region29
    $region28: #{attack_detection_forward.2} parent=1 // pred_region
      _
    $region29: #{attack_detection_forward.2} parent=1 // pred_fallthru
      _
    // Predicated region
    $region30: #{attack_detection_forward.2} parent=1 // pred_check
      _
    $region31: #{attack_detection_forward.2} parent=1 // pred_check_branch
      %67 = sbr.rel (0) target = $region33
    $region32: #{attack_detection_forward.2} parent=1 // pred_region
      %69 = vsyncadd [#allocation14], 0
      %s70 = sshll.u32 %s6, 4
      %s71 = int_to_ptr.hbm [resolvable:$true] %s70
      %s72 = sshll.u32 [#allocation13], 4
      %s73 = int_to_ptr.vmem [resolvable:$true] %s72
      %78 = dma.hbm_to_vmem [thread:$0]  %s71, 512, %s73, [#allocation14], 128, 128, 8
    $region33: #{attack_detection_forward.2} parent=1 // pred_fallthru
      _
    // Predicated region
    $region34: #{attack_detection_forward.2} parent=1 // pred_check
      _
    $region35: #{attack_detection_forward.2} parent=1 // pred_check_branch
      %80 = sbr.rel (0) target = $region37
    $region36: #{attack_detection_forward.2} parent=1 // pred_region
      _
    $region37: #{attack_detection_forward.2} parent=1 // pred_fallthru
      _
    // Predicated region
    $region38: #{attack_detection_forward.2} parent=1 // pred_check
      _
    $region39: #{attack_detection_forward.2} parent=1 // pred_check_branch
      %82 = sbr.rel (0) target = $region41
    $region40: #{attack_detection_forward.2} parent=1 // pred_region
      %84 = dma.done [#allocation9], 256
    $region41: #{attack_detection_forward.2} parent=1 // pred_fallthru
      _
    // Predicated region
    $region42: #{attack_detection_forward.2} parent=1 // pred_check
      _
    $region43: #{attack_detection_forward.2} parent=1 // pred_check_branch
      %86 = sbr.rel (0) target = $region45
    $region44: #{attack_detection_forward.2} parent=1 // pred_region
      %88 = dma.done [#allocation11], 512
    $region45: #{attack_detection_forward.2} parent=1 // pred_fallthru
      _
    // Predicated region
    $region46: #{attack_detection_forward.2} parent=1 // pred_check
      _
    $region47: #{attack_detection_forward.2} parent=1 // pred_check_branch
      %90 = sbr.rel (0) target = $region49
    $region48: #{attack_detection_forward.2} parent=1 // pred_region
      %92 = dma.done [#allocation11], 512
    $region49: #{attack_detection_forward.2} parent=1 // pred_fallthru
      _
    // Predicated region
    $region50: #{attack_detection_forward.2} parent=1 // pred_check
      _
    $region51: #{attack_detection_forward.2} parent=1 // pred_check_branch
      %94 = sbr.rel (0) target = $region53
    $region52: #{attack_detection_forward.2} parent=1 // pred_region
      %96 = dma.done [#allocation14], 512
    $region53: #{attack_detection_forward.2} parent=1 // pred_fallthru
      _
    %v97 = vld [vmem:[%s8] sm:$0x3]
    %v98 = vlaneseq
    %v99 = vshrl.u32 %v98, 7
    %vm101 = vcmp.lt.s32.totalorder %v99, 2
    %v102 = vsel %vm101, %v97, %v15
    %v103 = vlaneseq
    %v104 = vand.u32 %v103, 127
    %vm106 = vcmp.lt.s32.totalorder %v104, 16
    %v107 = vsel %vm106, %v102, %v15
    %s109 = ssub.s32 256, 1
    %110 = vst [vmem:[#allocation15] sm:%s109] %v107
    %s111 = scalar_lea.vmem %s8, 2
    %v112 = vld [vmem:[%s111] sm:$0x3]
    %v113 = vlaneseq
    %v114 = vshrl.u32 %v113, 7
    %vm116 = vcmp.lt.s32.totalorder %v114, 2
    %v117 = vsel %vm116, %v112, %v15
    %v118 = vlaneseq
    %v119 = vand.u32 %v118, 127
    %vm121 = vcmp.lt.s32.totalorder %v119, 16
    %v122 = vsel %vm121, %v117, %v15
    %s123 = scalar_lea.vmem [#allocation15], 8
    %s125 = ssub.s32 256, 1
    %126 = vst [vmem:[%s123] sm:%s125] %v122
    %s127 = scalar_lea.vmem %s8, 4
    %v128 = vld [vmem:[%s127] sm:$0x3]
    %v129 = vlaneseq
    %v130 = vshrl.u32 %v129, 7
    %vm132 = vcmp.lt.s32.totalorder %v130, 2
    %v133 = vsel %vm132, %v128, %v15
    %v134 = vlaneseq
    %v135 = vand.u32 %v134, 127
    %vm137 = vcmp.lt.s32.totalorder %v135, 16
    %v138 = vsel %vm137, %v133, %v15
    %s139 = scalar_lea.vmem [#allocation15], 16
    %s141 = ssub.s32 256, 1
    %142 = vst [vmem:[%s139] sm:%s141] %v138
    %s143 = scalar_lea.vmem %s8, 6
    %v144 = vld [vmem:[%s143] sm:$0x3]
    %v145 = vlaneseq
    %v146 = vshrl.u32 %v145, 7
    %vm148 = vcmp.lt.s32.totalorder %v146, 2
    %v149 = vsel %vm148, %v144, %v15
    %v150 = vlaneseq
    %v151 = vand.u32 %v150, 127
    %vm153 = vcmp.lt.s32.totalorder %v151, 16
    %v154 = vsel %vm153, %v149, %v15
    %s155 = scalar_lea.vmem [#allocation15], 24
    %s157 = ssub.s32 256, 1
    %158 = vst [vmem:[%s155] sm:%s157] %v154
    %s159 = scalar_lea.vmem %s8, 8
    %v160 = vld [vmem:[%s159] sm:$0x3]
    %v161 = vlaneseq
    %v162 = vshrl.u32 %v161, 7
    %vm164 = vcmp.lt.s32.totalorder %v162, 2
    %v165 = vsel %vm164, %v160, %v15
    %v166 = vlaneseq
    %v167 = vand.u32 %v166, 127
    %vm169 = vcmp.lt.s32.totalorder %v167, 16
    %v170 = vsel %vm169, %v165, %v15
    %s171 = scalar_lea.vmem [#allocation15], 32
    %s173 = ssub.s32 256, 1
    %174 = vst [vmem:[%s171] sm:%s173] %v170
    %s175 = scalar_lea.vmem %s8, 10
    %v176 = vld [vmem:[%s175] sm:$0x3]
    %v177 = vlaneseq
    %v178 = vshrl.u32 %v177, 7
    %vm180 = vcmp.lt.s32.totalorder %v178, 2
    %v181 = vsel %vm180, %v176, %v15
    %v182 = vlaneseq
    %v183 = vand.u32 %v182, 127
    %vm185 = vcmp.lt.s32.totalorder %v183, 16
    %v186 = vsel %vm185, %v181, %v15
    %s187 = scalar_lea.vmem [#allocation15], 40
    %s189 = ssub.s32 256, 1
    %190 = vst [vmem:[%s187] sm:%s189] %v186
    %s191 = scalar_lea.vmem %s8, 12
    %v192 = vld [vmem:[%s191] sm:$0x3]
    %v193 = vlaneseq
    %v194 = vshrl.u32 %v193, 7
    %vm196 = vcmp.lt.s32.totalorder %v194, 2
    %v197 = vsel %vm196, %v192, %v15
    %v198 = vlaneseq
    %v199 = vand.u32 %v198, 127
    %vm201 = vcmp.lt.s32.totalorder %v199, 16
    %v202 = vsel %vm201, %v197, %v15
    %s203 = scalar_lea.vmem [#allocation15], 48
    %s205 = ssub.s32 256, 1
    %206 = vst [vmem:[%s203] sm:%s205] %v202
    %s207 = scalar_lea.vmem %s8, 14
    %v208 = vld [vmem:[%s207] sm:$0x3]
    %v209 = vlaneseq
    %v210 = vshrl.u32 %v209, 7
    %vm212 = vcmp.lt.s32.totalorder %v210, 2
    %v213 = vsel %vm212, %v208, %v15
    %v214 = vlaneseq
    %v215 = vand.u32 %v214, 127
    %vm217 = vcmp.lt.s32.totalorder %v215, 16
    %v218 = vsel %vm217, %v213, %v15
    %s219 = scalar_lea.vmem [#allocation15], 56
    %s221 = ssub.s32 256, 1
    %222 = vst [vmem:[%s219] sm:%s221] %v218
    %v223 = vld [vmem:[#allocation15] sm:$0xff]
    %v224 = vld [vmem:[#allocation15 + $0x8] sm:$0xff]
    %v225 = vld [vmem:[#allocation15 + $0x10] sm:$0xff]
    %v226 = vld [vmem:[#allocation15 + $0x18] sm:$0xff]
    %v227 = vld [vmem:[#allocation15 + $0x20] sm:$0xff]
    %v228 = vld [vmem:[#allocation15 + $0x28] sm:$0xff]
    %v229 = vld [vmem:[#allocation15 + $0x30] sm:$0xff]
    %v230 = vld [vmem:[#allocation15 + $0x38] sm:$0xff]
    %v231 = vld [vmem:[#allocation8] sm:$0xff]
    %v232 = vld [vmem:[#allocation8 + $0x8] sm:$0xff]
    %v233 = vld [vmem:[%s1] sm:$0xff]
    %v234 = vld [vmem:[%s1 + $0x8] sm:$0xff]
    %v235 = vld [vmem:[%s1 + $0x10] sm:$0xff]
    %v236 = vld [vmem:[%s1 + $0x18] sm:$0xff]
    %v237 = vld [vmem:[%s2] sm:$0x1]
    %v239 = vperm.slane %v237, 0
    %vm241 = vcmask 130048
    %v243 = vsel %vm241, %v223, 0
    %v246 = vsel %vm241, %v224, 0
    %v249 = vsel %vm241, %v225, 0
    %v252 = vsel %vm241, %v226, 0
    %v255 = vsel %vm241, %v227, 0
    %v258 = vsel %vm241, %v228, 0
    %v261 = vsel %vm241, %v229, 0
    %v264 = vsel %vm241, %v230, 0
    %266 = vmatpush.msra.mxu0 0.0
    %267 = vmatpush.msra.mxu0 0.0
    %268 = vmatpush.msra.mxu0 0.0
    %269 = vmatpush.msra.mxu0 0.0
    %270 = vmatpush.msra.mxu0 0.0
    %271 = vmatpush.msra.mxu0 0.0
    %272 = vmatpush.msra.mxu0 0.0
    %273 = vmatpush.msra.mxu0 0.0
    %274 = vmatpush.msra.mxu0 0.0
    %275 = vmatpush.msra.mxu0 0.0
    %276 = vmatpush.msra.mxu0 0.0
    %277 = vmatpush.msra.mxu0 0.0
    %278 = vmatpush.msra.mxu0 0.0
    %279 = vmatpush.msra.mxu0 0.0
    %280 = vmatpush.msra.mxu0 %v232
    %281 = vmatpush.msra.mxu0 %v231
    %282 = vmatmul.f32.gmra.mxu0 %v243
    %v283 = vpop.f32.mrf.mxu0
    %v284 = vadd.f32 %v239, %v283
    %285 = vmatmul.f32.gmra.mxu0 %v246
    %v286 = vpop.f32.mrf.mxu0
    %v287 = vadd.f32 %v239, %v286
    %288 = vmatmul.f32.gmra.mxu0 %v249
    %v289 = vpop.f32.mrf.mxu0
    %v290 = vadd.f32 %v239, %v289
    %291 = vmatmul.f32.gmra.mxu0 %v252
    %v292 = vpop.f32.mrf.mxu0
    %v293 = vadd.f32 %v239, %v292
    %294 = vmatmul.f32.gmra.mxu0 %v255
    %v295 = vpop.f32.mrf.mxu0
    %v296 = vadd.f32 %v239, %v295
    %297 = vmatmul.f32.gmra.mxu0 %v258
    %v298 = vpop.f32.mrf.mxu0
    %v299 = vadd.f32 %v239, %v298
    %300 = vmatmul.f32.gmra.mxu0 %v261
    %v301 = vpop.f32.mrf.mxu0
    %v302 = vadd.f32 %v239, %v301
    %303 = vmatmul.f32.gmra.mxu0 %v264
    %v304 = vpop.f32.mrf.mxu0
    %v305 = vadd.f32 %v239, %v304
    %306 = vdwg.mxu0
    %vm307 = vcmask 261120
    %v309 = vsel %vm307, 0.0, 0
    %311 = vmatpush.msra.mxu0 0.0
    %312 = vmatpush.msra.mxu0 0.0
    %313 = vmatpush.msra.mxu0 0.0
    %314 = vmatpush.msra.mxu0 0.0
    %315 = vmatpush.msra.mxu0 0.0
    %316 = vmatpush.msra.mxu0 0.0
    %317 = vmatpush.msra.mxu0 0.0
    %318 = vmatpush.msra.mxu0 0.0
    %319 = vmatpush.msra.mxu0 0.0
    %320 = vmatpush.msra.mxu0 0.0
    %321 = vmatpush.msra.mxu0 0.0
    %322 = vmatpush.msra.mxu0 0.0
    %323 = vmatpush.msra.mxu0 %v236
    %324 = vmatpush.msra.mxu0 %v235
    %325 = vmatpush.msra.mxu0 %v234
    %326 = vmatpush.msra.mxu0 %v233
    %327 = vmatmul.f32.gmra.mxu0 %v309
    %v328 = vpop.f32.mrf.mxu0
    %v329 = vadd.f32 0.0, %v328
    %330 = vdwg.mxu0
    %v331 = vadd.f32 %v284, %v329
    %v332 = vxor.u32 %v331, 2147483648
    %v333 = vmul.f32 %v332, 1.442695
    %v334 = vpow.pop %v333
    %v335 = vadd.f32 %v334, 1.0
    %v336 = vrcp.pop %v335
    %v337 = vmul.f32 %v335, %v336
    %v338 = vsub.f32 1.0, %v337
    %v339 = vmul.f32 %v336, %v338
    %v340 = vadd.f32 %v336, %v339
    %vm341 = vweird.f32 %v335
    %vm342 = vweird.f32 %v336
    %vm343 = vmor %vm341, %vm342
    %v344 = vsel %vm343, %v336, %v340
    %v345 = vand.u32 2147483647, %v335
    %vm346 = vcmp.eq.f32.partialorder %v345, 8.507059e+37
    %v347 = vand.u32 %v335, 2147483648
    %v348 = vor.u32 1.1754944e-38, %v347
    %v349 = vsel %vm346, %v348, %v344
    %v350 = vmul.f32 1.0, %v349
    %v351 = vmul.f32 %v350, 2.0
    %v352 = vsub.f32 %v351, 1.0
    %v353 = vmul.f32 %v350, 0.0
    %355 = vrot.lane.b32.xlu0 %v352, 64
    %v356 = vpop.permute.xlu0 %355
    %v358 = vmul.f32 %v350, %v356
    %360 = vrot.lane.b32.xlu0 %v358, 32
    %v361 = vpop.permute.xlu0 %360
    %v363 = vadd.f32 %v353, %v361
    %v364 = vtanh.pop %v363
    %366 = vrot.lane.b32.xlu0 %v364, 64
    %v367 = vpop.permute.xlu0 %366
    %v369 = vmul.f32 %v350, %v367
    %371 = vrot.lane.b32.xlu0 %v369, 32
    %v372 = vpop.permute.xlu0 %371
    %374 = vst.msk [vmem:[#allocation2] sm:$0xff] %vm307, %v372
    %v375 = vsel %vm307, %v372, 0
    %377 = vmatpush.msra.mxu0 0.0
    %378 = vmatpush.msra.mxu0 0.0
    %379 = vmatpush.msra.mxu0 0.0
    %380 = vmatpush.msra.mxu0 0.0
    %381 = vmatpush.msra.mxu0 0.0
    %382 = vmatpush.msra.mxu0 0.0
    %383 = vmatpush.msra.mxu0 0.0
    %384 = vmatpush.msra.mxu0 0.0
    %385 = vmatpush.msra.mxu0 0.0
    %386 = vmatpush.msra.mxu0 0.0
    %387 = vmatpush.msra.mxu0 0.0
    %388 = vmatpush.msra.mxu0 0.0
    %389 = vmatpush.msra.mxu0 %v236
    %390 = vmatpush.msra.mxu0 %v235
    %391 = vmatpush.msra.mxu0 %v234
    %392 = vmatpush.msra.mxu0 %v233
    %393 = vmatmul.f32.gmra.mxu0 %v375
    %v394 = vpop.f32.mrf.mxu0
    %v395 = vadd.f32 0.0, %v394
    %396 = vdwg.mxu0
    %v397 = vadd.f32 %v287, %v395
    %v398 = vxor.u32 %v397, 2147483648
    %v399 = vmul.f32 %v398, 1.442695
    %v400 = vpow.pop %v399
    %v401 = vadd.f32 %v400, 1.0
    %v402 = vrcp.pop %v401
    %v403 = vmul.f32 %v401, %v402
    %v404 = vsub.f32 1.0, %v403
    %v405 = vmul.f32 %v402, %v404
    %v406 = vadd.f32 %v402, %v405
    %vm407 = vweird.f32 %v401
    %vm408 = vweird.f32 %v402
    %vm409 = vmor %vm407, %vm408
    %v410 = vsel %vm409, %v402, %v406
    %v411 = vand.u32 2147483647, %v401
    %vm412 = vcmp.eq.f32.partialorder %v411, 8.507059e+37
    %v413 = vand.u32 %v401, 2147483648
    %v414 = vor.u32 1.1754944e-38, %v413
    %v415 = vsel %vm412, %v414, %v410
    %v416 = vmul.f32 1.0, %v415
    %v417 = vmul.f32 %v416, 2.0
    %v418 = vsub.f32 %v417, 1.0
    %v419 = vmul.f32 %v416, %v363
    %421 = vrot.lane.b32.xlu0 %v418, 64
    %v422 = vpop.permute.xlu0 %421
    %v424 = vmul.f32 %v416, %v422
    %426 = vrot.lane.b32.xlu0 %v424, 32
    %v427 = vpop.permute.xlu0 %426
    %v429 = vadd.f32 %v419, %v427
    %v430 = vtanh.pop %v429
    %432 = vrot.lane.b32.xlu0 %v430, 64
    %v433 = vpop.permute.xlu0 %432
    %v435 = vmul.f32 %v416, %v433
    %437 = vrot.lane.b32.xlu0 %v435, 32
    %v438 = vpop.permute.xlu0 %437
    %440 = vst.msk [vmem:[#allocation2 + $0x8] sm:$0xff] %vm307, %v438
    %v441 = vsel %vm307, %v438, 0
    %443 = vmatpush.msra.mxu0 0.0
    %444 = vmatpush.msra.mxu0 0.0
    %445 = vmatpush.msra.mxu0 0.0
    %446 = vmatpush.msra.mxu0 0.0
    %447 = vmatpush.msra.mxu0 0.0
    %448 = vmatpush.msra.mxu0 0.0
    %449 = vmatpush.msra.mxu0 0.0
    %450 = vmatpush.msra.mxu0 0.0
    %451 = vmatpush.msra.mxu0 0.0
    %452 = vmatpush.msra.mxu0 0.0
    %453 = vmatpush.msra.mxu0 0.0
    %454 = vmatpush.msra.mxu0 0.0
    %455 = vmatpush.msra.mxu0 %v236
    %456 = vmatpush.msra.mxu0 %v235
    %457 = vmatpush.msra.mxu0 %v234
    %458 = vmatpush.msra.mxu0 %v233
    %459 = vmatmul.f32.gmra.mxu0 %v441
    %v460 = vpop.f32.mrf.mxu0
    %v461 = vadd.f32 0.0, %v460
    %462 = vdwg.mxu0
    %v463 = vadd.f32 %v290, %v461
    %v464 = vxor.u32 %v463, 2147483648
    %v465 = vmul.f32 %v464, 1.442695
    %v466 = vpow.pop %v465
    %v467 = vadd.f32 %v466, 1.0
    %v468 = vrcp.pop %v467
    %v469 = vmul.f32 %v467, %v468
    %v470 = vsub.f32 1.0, %v469
    %v471 = vmul.f32 %v468, %v470
    %v472 = vadd.f32 %v468, %v471
    %vm473 = vweird.f32 %v467
    %vm474 = vweird.f32 %v468
    %vm475 = vmor %vm473, %vm474
    %v476 = vsel %vm475, %v468, %v472
    %v477 = vand.u32 2147483647, %v467
    %vm478 = vcmp.eq.f32.partialorder %v477, 8.507059e+37
    %v479 = vand.u32 %v467, 2147483648
    %v480 = vor.u32 1.1754944e-38, %v479
    %v481 = vsel %vm478, %v480, %v476
    %v482 = vmul.f32 1.0, %v481
    %v483 = vmul.f32 %v482, 2.0
    %v484 = vsub.f32 %v483, 1.0
    %v485 = vmul.f32 %v482, %v429
    %487 = vrot.lane.b32.xlu0 %v484, 64
    %v488 = vpop.permute.xlu0 %487
    %v490 = vmul.f32 %v482, %v488
    %492 = vrot.lane.b32.xlu0 %v490, 32
    %v493 = vpop.permute.xlu0 %492
    %v495 = vadd.f32 %v485, %v493
    %v496 = vtanh.pop %v495
    %498 = vrot.lane.b32.xlu0 %v496, 64
    %v499 = vpop.permute.xlu0 %498
    %v501 = vmul.f32 %v482, %v499
    %503 = vrot.lane.b32.xlu0 %v501, 32
    %v504 = vpop.permute.xlu0 %503
    %506 = vst.msk [vmem:[#allocation2 + $0x10] sm:$0xff] %vm307, %v504
    %v507 = vsel %vm307, %v504, 0
    %509 = vmatpush.msra.mxu0 0.0
    %510 = vmatpush.msra.mxu0 0.0
    %511 = vmatpush.msra.mxu0 0.0
    %512 = vmatpush.msra.mxu0 0.0
    %513 = vmatpush.msra.mxu0 0.0
    %514 = vmatpush.msra.mxu0 0.0
    %515 = vmatpush.msra.mxu0 0.0
    %516 = vmatpush.msra.mxu0 0.0
    %517 = vmatpush.msra.mxu0 0.0
    %518 = vmatpush.msra.mxu0 0.0
    %519 = vmatpush.msra.mxu0 0.0
    %520 = vmatpush.msra.mxu0 0.0
    %521 = vmatpush.msra.mxu0 %v236
    %522 = vmatpush.msra.mxu0 %v235
    %523 = vmatpush.msra.mxu0 %v234
    %524 = vmatpush.msra.mxu0 %v233
    %525 = vmatmul.f32.gmra.mxu0 %v507
    %v526 = vpop.f32.mrf.mxu0
    %v527 = vadd.f32 0.0, %v526
    %528 = vdwg.mxu0
    %v529 = vadd.f32 %v293, %v527
    %v530 = vxor.u32 %v529, 2147483648
    %v531 = vmul.f32 %v530, 1.442695
    %v532 = vpow.pop %v531
    %v533 = vadd.f32 %v532, 1.0
    %v534 = vrcp.pop %v533
    %v535 = vmul.f32 %v533, %v534
    %v536 = vsub.f32 1.0, %v535
    %v537 = vmul.f32 %v534, %v536
    %v538 = vadd.f32 %v534, %v537
    %vm539 = vweird.f32 %v533
    %vm540 = vweird.f32 %v534
    %vm541 = vmor %vm539, %vm540
    %v542 = vsel %vm541, %v534, %v538
    %v543 = vand.u32 2147483647, %v533
    %vm544 = vcmp.eq.f32.partialorder %v543, 8.507059e+37
    %v545 = vand.u32 %v533, 2147483648
    %v546 = vor.u32 1.1754944e-38, %v545
    %v547 = vsel %vm544, %v546, %v542
    %v548 = vmul.f32 1.0, %v547
    %v549 = vmul.f32 %v548, 2.0
    %v550 = vsub.f32 %v549, 1.0
    %v551 = vmul.f32 %v548, %v495
    %553 = vrot.lane.b32.xlu0 %v550, 64
    %v554 = vpop.permute.xlu0 %553
    %v556 = vmul.f32 %v548, %v554
    %558 = vrot.lane.b32.xlu0 %v556, 32
    %v559 = vpop.permute.xlu0 %558
    %v561 = vadd.f32 %v551, %v559
    %v562 = vtanh.pop %v561
    %564 = vrot.lane.b32.xlu0 %v562, 64
    %v565 = vpop.permute.xlu0 %564
    %v567 = vmul.f32 %v548, %v565
    %569 = vrot.lane.b32.xlu0 %v567, 32
    %v570 = vpop.permute.xlu0 %569
    %572 = vst.msk [vmem:[#allocation2 + $0x18] sm:$0xff] %vm307, %v570
    %v573 = vsel %vm307, %v570, 0
    %575 = vmatpush.msra.mxu0 0.0
    %576 = vmatpush.msra.mxu0 0.0
    %577 = vmatpush.msra.mxu0 0.0
    %578 = vmatpush.msra.mxu0 0.0
    %579 = vmatpush.msra.mxu0 0.0
    %580 = vmatpush.msra.mxu0 0.0
    %581 = vmatpush.msra.mxu0 0.0
    %582 = vmatpush.msra.mxu0 0.0
    %583 = vmatpush.msra.mxu0 0.0
    %584 = vmatpush.msra.mxu0 0.0
    %585 = vmatpush.msra.mxu0 0.0
    %586 = vmatpush.msra.mxu0 0.0
    %587 = vmatpush.msra.mxu0 %v236
    %588 = vmatpush.msra.mxu0 %v235
    %589 = vmatpush.msra.mxu0 %v234
    %590 = vmatpush.msra.mxu0 %v233
    %591 = vmatmul.f32.gmra.mxu0 %v573
    %v592 = vpop.f32.mrf.mxu0
    %v593 = vadd.f32 0.0, %v592
    %594 = vdwg.mxu0
    %v595 = vadd.f32 %v296, %v593
    %v596 = vxor.u32 %v595, 2147483648
    %v597 = vmul.f32 %v596, 1.442695
    %v598 = vpow.pop %v597
    %v599 = vadd.f32 %v598, 1.0
    %v600 = vrcp.pop %v599
    %v601 = vmul.f32 %v599, %v600
    %v602 = vsub.f32 1.0, %v601
    %v603 = vmul.f32 %v600, %v602
    %v604 = vadd.f32 %v600, %v603
    %vm605 = vweird.f32 %v599
    %vm606 = vweird.f32 %v600
    %vm607 = vmor %vm605, %vm606
    %v608 = vsel %vm607, %v600, %v604
    %v609 = vand.u32 2147483647, %v599
    %vm610 = vcmp.eq.f32.partialorder %v609, 8.507059e+37
    %v611 = vand.u32 %v599, 2147483648
    %v612 = vor.u32 1.1754944e-38, %v611
    %v613 = vsel %vm610, %v612, %v608
    %v614 = vmul.f32 1.0, %v613
    %v615 = vmul.f32 %v614, 2.0
    %v616 = vsub.f32 %v615, 1.0
    %v617 = vmul.f32 %v614, %v561
    %619 = vrot.lane.b32.xlu0 %v616, 64
    %v620 = vpop.permute.xlu0 %619
    %v622 = vmul.f32 %v614, %v620
    %624 = vrot.lane.b32.xlu0 %v622, 32
    %v625 = vpop.permute.xlu0 %624
    %v627 = vadd.f32 %v617, %v625
    %v628 = vtanh.pop %v627
    %630 = vrot.lane.b32.xlu0 %v628, 64
    %v631 = vpop.permute.xlu0 %630
    %v633 = vmul.f32 %v614, %v631
    %635 = vrot.lane.b32.xlu0 %v633, 32
    %v636 = vpop.permute.xlu0 %635
    %638 = vst.msk [vmem:[#allocation2 + $0x20] sm:$0xff] %vm307, %v636
    %v639 = vsel %vm307, %v636, 0
    %641 = vmatpush.msra.mxu0 0.0
    %642 = vmatpush.msra.mxu0 0.0
    %643 = vmatpush.msra.mxu0 0.0
    %644 = vmatpush.msra.mxu0 0.0
    %645 = vmatpush.msra.mxu0 0.0
    %646 = vmatpush.msra.mxu0 0.0
    %647 = vmatpush.msra.mxu0 0.0
    %648 = vmatpush.msra.mxu0 0.0
    %649 = vmatpush.msra.mxu0 0.0
    %650 = vmatpush.msra.mxu0 0.0
    %651 = vmatpush.msra.mxu0 0.0
    %652 = vmatpush.msra.mxu0 0.0
    %653 = vmatpush.msra.mxu0 %v236
    %654 = vmatpush.msra.mxu0 %v235
    %655 = vmatpush.msra.mxu0 %v234
    %656 = vmatpush.msra.mxu0 %v233
    %657 = vmatmul.f32.gmra.mxu0 %v639
    %v658 = vpop.f32.mrf.mxu0
    %v659 = vadd.f32 0.0, %v658
    %660 = vdwg.mxu0
    %v661 = vadd.f32 %v299, %v659
    %v662 = vxor.u32 %v661, 2147483648
    %v663 = vmul.f32 %v662, 1.442695
    %v664 = vpow.pop %v663
    %v665 = vadd.f32 %v664, 1.0
    %v666 = vrcp.pop %v665
    %v667 = vmul.f32 %v665, %v666
    %v668 = vsub.f32 1.0, %v667
    %v669 = vmul.f32 %v666, %v668
    %v670 = vadd.f32 %v666, %v669
    %vm671 = vweird.f32 %v665
    %vm672 = vweird.f32 %v666
    %vm673 = vmor %vm671, %vm672
    %v674 = vsel %vm673, %v666, %v670
    %v675 = vand.u32 2147483647, %v665
    %vm676 = vcmp.eq.f32.partialorder %v675, 8.507059e+37
    %v677 = vand.u32 %v665, 2147483648
    %v678 = vor.u32 1.1754944e-38, %v677
    %v679 = vsel %vm676, %v678, %v674
    %v680 = vmul.f32 1.0, %v679
    %v681 = vmul.f32 %v680, 2.0
    %v682 = vsub.f32 %v681, 1.0
    %v683 = vmul.f32 %v680, %v627
    %685 = vrot.lane.b32.xlu0 %v682, 64
    %v686 = vpop.permute.xlu0 %685
    %v688 = vmul.f32 %v680, %v686
    %690 = vrot.lane.b32.xlu0 %v688, 32
    %v691 = vpop.permute.xlu0 %690
    %v693 = vadd.f32 %v683, %v691
    %v694 = vtanh.pop %v693
    %696 = vrot.lane.b32.xlu0 %v694, 64
    %v697 = vpop.permute.xlu0 %696
    %v699 = vmul.f32 %v680, %v697
    %701 = vrot.lane.b32.xlu0 %v699, 32
    %v702 = vpop.permute.xlu0 %701
    %704 = vst.msk [vmem:[#allocation2 + $0x28] sm:$0xff] %vm307, %v702
    %v705 = vsel %vm307, %v702, 0
    %707 = vmatpush.msra.mxu0 0.0
    %708 = vmatpush.msra.mxu0 0.0
    %709 = vmatpush.msra.mxu0 0.0
    %710 = vmatpush.msra.mxu0 0.0
    %711 = vmatpush.msra.mxu0 0.0
    %712 = vmatpush.msra.mxu0 0.0
    %713 = vmatpush.msra.mxu0 0.0
    %714 = vmatpush.msra.mxu0 0.0
    %715 = vmatpush.msra.mxu0 0.0
    %716 = vmatpush.msra.mxu0 0.0
    %717 = vmatpush.msra.mxu0 0.0
    %718 = vmatpush.msra.mxu0 0.0
    %719 = vmatpush.msra.mxu0 %v236
    %720 = vmatpush.msra.mxu0 %v235
    %721 = vmatpush.msra.mxu0 %v234
    %722 = vmatpush.msra.mxu0 %v233
    %723 = vmatmul.f32.gmra.mxu0 %v705
    %v724 = vpop.f32.mrf.mxu0
    %v725 = vadd.f32 0.0, %v724
    %726 = vdwg.mxu0
    %v727 = vadd.f32 %v302, %v725
    %v728 = vxor.u32 %v727, 2147483648
    %v729 = vmul.f32 %v728, 1.442695
    %v730 = vpow.pop %v729
    %v731 = vadd.f32 %v730, 1.0
    %v732 = vrcp.pop %v731
    %v733 = vmul.f32 %v731, %v732
    %v734 = vsub.f32 1.0, %v733
    %v735 = vmul.f32 %v732, %v734
    %v736 = vadd.f32 %v732, %v735
    %vm737 = vweird.f32 %v731
    %vm738 = vweird.f32 %v732
    %vm739 = vmor %vm737, %vm738
    %v740 = vsel %vm739, %v732, %v736
    %v741 = vand.u32 2147483647, %v731
    %vm742 = vcmp.eq.f32.partialorder %v741, 8.507059e+37
    %v743 = vand.u32 %v731, 2147483648
    %v744 = vor.u32 1.1754944e-38, %v743
    %v745 = vsel %vm742, %v744, %v740
    %v746 = vmul.f32 1.0, %v745
    %v747 = vmul.f32 %v746, 2.0
    %v748 = vsub.f32 %v747, 1.0
    %v749 = vmul.f32 %v746, %v693
    %751 = vrot.lane.b32.xlu0 %v748, 64
    %v752 = vpop.permute.xlu0 %751
    %v754 = vmul.f32 %v746, %v752
    %756 = vrot.lane.b32.xlu0 %v754, 32
    %v757 = vpop.permute.xlu0 %756
    %v759 = vadd.f32 %v749, %v757
    %v760 = vtanh.pop %v759
    %762 = vrot.lane.b32.xlu0 %v760, 64
    %v763 = vpop.permute.xlu0 %762
    %v765 = vmul.f32 %v746, %v763
    %767 = vrot.lane.b32.xlu0 %v765, 32
    %v768 = vpop.permute.xlu0 %767
    %770 = vst.msk [vmem:[#allocation2 + $0x30] sm:$0xff] %vm307, %v768
    %v771 = vsel %vm307, %v768, 0
    %773 = vmatpush.msra.mxu0 0.0
    %774 = vmatpush.msra.mxu0 0.0
    %775 = vmatpush.msra.mxu0 0.0
    %776 = vmatpush.msra.mxu0 0.0
    %777 = vmatpush.msra.mxu0 0.0
    %778 = vmatpush.msra.mxu0 0.0
    %779 = vmatpush.msra.mxu0 0.0
    %780 = vmatpush.msra.mxu0 0.0
    %781 = vmatpush.msra.mxu0 0.0
    %782 = vmatpush.msra.mxu0 0.0
    %783 = vmatpush.msra.mxu0 0.0
    %784 = vmatpush.msra.mxu0 0.0
    %785 = vmatpush.msra.mxu0 %v236
    %786 = vmatpush.msra.mxu0 %v235
    %787 = vmatpush.msra.mxu0 %v234
    %788 = vmatpush.msra.mxu0 %v233
    %789 = vmatmul.f32.gmra.mxu0 %v771
    %v790 = vpop.f32.mrf.mxu0
    %v791 = vadd.f32 0.0, %v790
    %792 = vdwg.mxu0
    %v793 = vadd.f32 %v305, %v791
    %v794 = vxor.u32 %v793, 2147483648
    %v795 = vmul.f32 %v794, 1.442695
    %v796 = vpow.pop %v795
    %v797 = vadd.f32 %v796, 1.0
    %v798 = vrcp.pop %v797
    %v799 = vmul.f32 %v797, %v798
    %v800 = vsub.f32 1.0, %v799
    %v801 = vmul.f32 %v798, %v800
    %v802 = vadd.f32 %v798, %v801
    %vm803 = vweird.f32 %v797
    %vm804 = vweird.f32 %v798
    %vm805 = vmor %vm803, %vm804
    %v806 = vsel %vm805, %v798, %v802
    %v807 = vand.u32 2147483647, %v797
    %vm808 = vcmp.eq.f32.partialorder %v807, 8.507059e+37
    %v809 = vand.u32 %v797, 2147483648
    %v810 = vor.u32 1.1754944e-38, %v809
    %v811 = vsel %vm808, %v810, %v806
    %v812 = vmul.f32 1.0, %v811
    %v813 = vmul.f32 %v812, 2.0
    %v814 = vsub.f32 %v813, 1.0
    %v815 = vmul.f32 %v812, %v759
    %817 = vrot.lane.b32.xlu0 %v814, 64
    %v818 = vpop.permute.xlu0 %817
    %v820 = vmul.f32 %v812, %v818
    %822 = vrot.lane.b32.xlu0 %v820, 32
    %v823 = vpop.permute.xlu0 %822
    %v825 = vadd.f32 %v815, %v823
    %v826 = vtanh.pop %v825
    %828 = vrot.lane.b32.xlu0 %v826, 64
    %v829 = vpop.permute.xlu0 %828
    %v831 = vmul.f32 %v812, %v829
    %833 = vrot.lane.b32.xlu0 %v831, 32
    %v834 = vpop.permute.xlu0 %833
    %836 = vst.msk [vmem:[#allocation2 + $0x38] sm:$0xff] %vm307, %v834
    %v837 = vld [vmem:[#allocation2] sm:$0xff]
    %v838 = vld [vmem:[#allocation2 + $0x8] sm:$0xff]
    %v839 = vld [vmem:[#allocation2 + $0x10] sm:$0xff]
    %v840 = vld [vmem:[#allocation2 + $0x18] sm:$0xff]
    %v841 = vld [vmem:[#allocation2 + $0x20] sm:$0xff]
    %v842 = vld [vmem:[#allocation2 + $0x28] sm:$0xff]
    %v843 = vld [vmem:[#allocation2 + $0x30] sm:$0xff]
    %v844 = vld [vmem:[#allocation2 + $0x38] sm:$0xff]
    %v845 = vld [vmem:[#allocation10] sm:$0xff]
    %v846 = vld [vmem:[#allocation10 + $0x8] sm:$0xff]
    %v847 = vld [vmem:[#allocation10 + $0x10] sm:$0xff]
    %v848 = vld [vmem:[#allocation10 + $0x18] sm:$0xff]
    %v849 = vld [vmem:[#allocation12] sm:$0xff]
    %v850 = vld [vmem:[#allocation12 + $0x8] sm:$0xff]
    %v851 = vld [vmem:[#allocation12 + $0x10] sm:$0xff]
    %v852 = vld [vmem:[#allocation12 + $0x18] sm:$0xff]
    %v853 = vld [vmem:[%s5] sm:$0x1]
    %v855 = vperm.slane %v853, 0
    %v858 = vsel %vm307, %v837, 0
    %v861 = vsel %vm307, %v838, 0
    %v864 = vsel %vm307, %v839, 0
    %v867 = vsel %vm307, %v840, 0
    %v870 = vsel %vm307, %v841, 0
    %v873 = vsel %vm307, %v842, 0
    %v876 = vsel %vm307, %v843, 0
    %v879 = vsel %vm307, %v844, 0
    %881 = vmatpush.msra.mxu0 0.0
    %882 = vmatpush.msra.mxu0 0.0
    %883 = vmatpush.msra.mxu0 0.0
    %884 = vmatpush.msra.mxu0 0.0
    %885 = vmatpush.msra.mxu0 0.0
    %886 = vmatpush.msra.mxu0 0.0
    %887 = vmatpush.msra.mxu0 0.0
    %888 = vmatpush.msra.mxu0 0.0
    %889 = vmatpush.msra.mxu0 0.0
    %890 = vmatpush.msra.mxu0 0.0
    %891 = vmatpush.msra.mxu0 0.0
    %892 = vmatpush.msra.mxu0 0.0
    %893 = vmatpush.msra.mxu0 %v848
    %894 = vmatpush.msra.mxu0 %v847
    %895 = vmatpush.msra.mxu0 %v846
    %896 = vmatpush.msra.mxu0 %v845
    %897 = vmatmul.f32.gmra.mxu0 %v858
    %v898 = vpop.f32.mrf.mxu0
    %v899 = vadd.f32 %v855, %v898
    %900 = vmatmul.f32.gmra.mxu0 %v861
    %v901 = vpop.f32.mrf.mxu0
    %v902 = vadd.f32 %v855, %v901
    %903 = vmatmul.f32.gmra.mxu0 %v864
    %v904 = vpop.f32.mrf.mxu0
    %v905 = vadd.f32 %v855, %v904
    %906 = vmatmul.f32.gmra.mxu0 %v867
    %v907 = vpop.f32.mrf.mxu0
    %v908 = vadd.f32 %v855, %v907
    %909 = vmatmul.f32.gmra.mxu0 %v870
    %v910 = vpop.f32.mrf.mxu0
    %v911 = vadd.f32 %v855, %v910
    %912 = vmatmul.f32.gmra.mxu0 %v873
    %v913 = vpop.f32.mrf.mxu0
    %v914 = vadd.f32 %v855, %v913
    %915 = vmatmul.f32.gmra.mxu0 %v876
    %v916 = vpop.f32.mrf.mxu0
    %v917 = vadd.f32 %v855, %v916
    %918 = vmatmul.f32.gmra.mxu0 %v879
    %v919 = vpop.f32.mrf.mxu0
    %v920 = vadd.f32 %v855, %v919
    %921 = vdwg.mxu0
    %922 = vmatpush.msra.mxu0 0.0
    %923 = vmatpush.msra.mxu0 0.0
    %924 = vmatpush.msra.mxu0 0.0
    %925 = vmatpush.msra.mxu0 0.0
    %926 = vmatpush.msra.mxu0 0.0
    %927 = vmatpush.msra.mxu0 0.0
    %928 = vmatpush.msra.mxu0 0.0
    %929 = vmatpush.msra.mxu0 0.0
    %930 = vmatpush.msra.mxu0 0.0
    %931 = vmatpush.msra.mxu0 0.0
    %932 = vmatpush.msra.mxu0 0.0
    %933 = vmatpush.msra.mxu0 0.0
    %934 = vmatpush.msra.mxu0 %v852
    %935 = vmatpush.msra.mxu0 %v851
    %936 = vmatpush.msra.mxu0 %v850
    %937 = vmatpush.msra.mxu0 %v849
    %938 = vmatmul.f32.gmra.mxu0 %v309
    %v939 = vpop.f32.mrf.mxu0
    %v940 = vadd.f32 0.0, %v939
    %941 = vdwg.mxu0
    %v942 = vadd.f32 %v899, %v940
    %v943 = vxor.u32 %v942, 2147483648
    %v944 = vmul.f32 %v943, 1.442695
    %v945 = vpow.pop %v944
    %v946 = vadd.f32 %v945, 1.0
    %v947 = vrcp.pop %v946
    %v948 = vmul.f32 %v946, %v947
    %v949 = vsub.f32 1.0, %v948
    %v950 = vmul.f32 %v947, %v949
    %v951 = vadd.f32 %v947, %v950
    %vm952 = vweird.f32 %v946
    %vm953 = vweird.f32 %v947
    %vm954 = vmor %vm952, %vm953
    %v955 = vsel %vm954, %v947, %v951
    %v956 = vand.u32 2147483647, %v946
    %vm957 = vcmp.eq.f32.partialorder %v956, 8.507059e+37
    %v958 = vand.u32 %v946, 2147483648
    %v959 = vor.u32 1.1754944e-38, %v958
    %v960 = vsel %vm957, %v959, %v955
    %v961 = vmul.f32 1.0, %v960
    %v962 = vmul.f32 %v961, 2.0
    %v963 = vsub.f32 %v962, 1.0
    %v964 = vmul.f32 %v961, 0.0
    %966 = vrot.lane.b32.xlu0 %v963, 64
    %v967 = vpop.permute.xlu0 %966
    %v969 = vmul.f32 %v961, %v967
    %971 = vrot.lane.b32.xlu0 %v969, 32
    %v972 = vpop.permute.xlu0 %971
    %v974 = vadd.f32 %v964, %v972
    %v975 = vtanh.pop %v974
    %977 = vrot.lane.b32.xlu0 %v975, 64
    %v978 = vpop.permute.xlu0 %977
    %v980 = vmul.f32 %v961, %v978
    %982 = vrot.lane.b32.xlu0 %v980, 32
    %v983 = vpop.permute.xlu0 %982
    %v984 = vsel %vm307, %v983, 0
    %986 = vmatpush.msra.mxu0 0.0
    %987 = vmatpush.msra.mxu0 0.0
    %988 = vmatpush.msra.mxu0 0.0
    %989 = vmatpush.msra.mxu0 0.0
    %990 = vmatpush.msra.mxu0 0.0
    %991 = vmatpush.msra.mxu0 0.0
    %992 = vmatpush.msra.mxu0 0.0
    %993 = vmatpush.msra.mxu0 0.0
    %994 = vmatpush.msra.mxu0 0.0
    %995 = vmatpush.msra.mxu0 0.0
    %996 = vmatpush.msra.mxu0 0.0
    %997 = vmatpush.msra.mxu0 0.0
    %998 = vmatpush.msra.mxu0 %v852
    %999 = vmatpush.msra.mxu0 %v851
    %1000 = vmatpush.msra.mxu0 %v850
    %1001 = vmatpush.msra.mxu0 %v849
    %1002 = vmatmul.f32.gmra.mxu0 %v984
    %v1003 = vpop.f32.mrf.mxu0
    %v1004 = vadd.f32 0.0, %v1003
    %1005 = vdwg.mxu0
    %v1006 = vadd.f32 %v902, %v1004
    %v1007 = vxor.u32 %v1006, 2147483648
    %v1008 = vmul.f32 %v1007, 1.442695
    %v1009 = vpow.pop %v1008
    %v1010 = vadd.f32 %v1009, 1.0
    %v1011 = vrcp.pop %v1010
    %v1012 = vmul.f32 %v1010, %v1011
    %v1013 = vsub.f32 1.0, %v1012
    %v1014 = vmul.f32 %v1011, %v1013
    %v1015 = vadd.f32 %v1011, %v1014
    %vm1016 = vweird.f32 %v1010
    %vm1017 = vweird.f32 %v1011
    %vm1018 = vmor %vm1016, %vm1017
    %v1019 = vsel %vm1018, %v1011, %v1015
    %v1020 = vand.u32 2147483647, %v1010
    %vm1021 = vcmp.eq.f32.partialorder %v1020, 8.507059e+37
    %v1022 = vand.u32 %v1010, 2147483648
    %v1023 = vor.u32 1.1754944e-38, %v1022
    %v1024 = vsel %vm1021, %v1023, %v1019
    %v1025 = vmul.f32 1.0, %v1024
    %v1026 = vmul.f32 %v1025, 2.0
    %v1027 = vsub.f32 %v1026, 1.0
    %v1028 = vmul.f32 %v1025, %v974
    %1030 = vrot.lane.b32.xlu0 %v1027, 64
    %v1031 = vpop.permute.xlu0 %1030
    %v1033 = vmul.f32 %v1025, %v1031
    %1035 = vrot.lane.b32.xlu0 %v1033, 32
    %v1036 = vpop.permute.xlu0 %1035
    %v1038 = vadd.f32 %v1028, %v1036
    %v1039 = vtanh.pop %v1038
    %1041 = vrot.lane.b32.xlu0 %v1039, 64
    %v1042 = vpop.permute.xlu0 %1041
    %v1044 = vmul.f32 %v1025, %v1042
    %1046 = vrot.lane.b32.xlu0 %v1044, 32
    %v1047 = vpop.permute.xlu0 %1046
    %v1048 = vsel %vm307, %v1047, 0
    %1050 = vmatpush.msra.mxu0 0.0
    %1051 = vmatpush.msra.mxu0 0.0
    %1052 = vmatpush.msra.mxu0 0.0
    %1053 = vmatpush.msra.mxu0 0.0
    %1054 = vmatpush.msra.mxu0 0.0
    %1055 = vmatpush.msra.mxu0 0.0
    %1056 = vmatpush.msra.mxu0 0.0
    %1057 = vmatpush.msra.mxu0 0.0
    %1058 = vmatpush.msra.mxu0 0.0
    %1059 = vmatpush.msra.mxu0 0.0
    %1060 = vmatpush.msra.mxu0 0.0
    %1061 = vmatpush.msra.mxu0 0.0
    %1062 = vmatpush.msra.mxu0 %v852
    %1063 = vmatpush.msra.mxu0 %v851
    %1064 = vmatpush.msra.mxu0 %v850
    %1065 = vmatpush.msra.mxu0 %v849
    %1066 = vmatmul.f32.gmra.mxu0 %v1048
    %v1067 = vpop.f32.mrf.mxu0
    %v1068 = vadd.f32 0.0, %v1067
    %1069 = vdwg.mxu0
    %v1070 = vadd.f32 %v905, %v1068
    %v1071 = vxor.u32 %v1070, 2147483648
    %v1072 = vmul.f32 %v1071, 1.442695
    %v1073 = vpow.pop %v1072
    %v1074 = vadd.f32 %v1073, 1.0
    %v1075 = vrcp.pop %v1074
    %v1076 = vmul.f32 %v1074, %v1075
    %v1077 = vsub.f32 1.0, %v1076
    %v1078 = vmul.f32 %v1075, %v1077
    %v1079 = vadd.f32 %v1075, %v1078
    %vm1080 = vweird.f32 %v1074
    %vm1081 = vweird.f32 %v1075
    %vm1082 = vmor %vm1080, %vm1081
    %v1083 = vsel %vm1082, %v1075, %v1079
    %v1084 = vand.u32 2147483647, %v1074
    %vm1085 = vcmp.eq.f32.partialorder %v1084, 8.507059e+37
    %v1086 = vand.u32 %v1074, 2147483648
    %v1087 = vor.u32 1.1754944e-38, %v1086
    %v1088 = vsel %vm1085, %v1087, %v1083
    %v1089 = vmul.f32 1.0, %v1088
    %v1090 = vmul.f32 %v1089, 2.0
    %v1091 = vsub.f32 %v1090, 1.0
    %v1092 = vmul.f32 %v1089, %v1038
    %1094 = vrot.lane.b32.xlu0 %v1091, 64
    %v1095 = vpop.permute.xlu0 %1094
    %v1097 = vmul.f32 %v1089, %v1095
    %1099 = vrot.lane.b32.xlu0 %v1097, 32
    %v1100 = vpop.permute.xlu0 %1099
    %v1102 = vadd.f32 %v1092, %v1100
    %v1103 = vtanh.pop %v1102
    %1105 = vrot.lane.b32.xlu0 %v1103, 64
    %v1106 = vpop.permute.xlu0 %1105
    %v1108 = vmul.f32 %v1089, %v1106
    %1110 = vrot.lane.b32.xlu0 %v1108, 32
    %v1111 = vpop.permute.xlu0 %1110
    %v1112 = vsel %vm307, %v1111, 0
    %1114 = vmatpush.msra.mxu0 0.0
    %1115 = vmatpush.msra.mxu0 0.0
    %1116 = vmatpush.msra.mxu0 0.0
    %1117 = vmatpush.msra.mxu0 0.0
    %1118 = vmatpush.msra.mxu0 0.0
    %1119 = vmatpush.msra.mxu0 0.0
    %1120 = vmatpush.msra.mxu0 0.0
    %1121 = vmatpush.msra.mxu0 0.0
    %1122 = vmatpush.msra.mxu0 0.0
    %1123 = vmatpush.msra.mxu0 0.0
    %1124 = vmatpush.msra.mxu0 0.0
    %1125 = vmatpush.msra.mxu0 0.0
    %1126 = vmatpush.msra.mxu0 %v852
    %1127 = vmatpush.msra.mxu0 %v851
    %1128 = vmatpush.msra.mxu0 %v850
    %1129 = vmatpush.msra.mxu0 %v849
    %1130 = vmatmul.f32.gmra.mxu0 %v1112
    %v1131 = vpop.f32.mrf.mxu0
    %v1132 = vadd.f32 0.0, %v1131
    %1133 = vdwg.mxu0
    %v1134 = vadd.f32 %v908, %v1132
    %v1135 = vxor.u32 %v1134, 2147483648
    %v1136 = vmul.f32 %v1135, 1.442695
    %v1137 = vpow.pop %v1136
    %v1138 = vadd.f32 %v1137, 1.0
    %v1139 = vrcp.pop %v1138
    %v1140 = vmul.f32 %v1138, %v1139
    %v1141 = vsub.f32 1.0, %v1140
    %v1142 = vmul.f32 %v1139, %v1141
    %v1143 = vadd.f32 %v1139, %v1142
    %vm1144 = vweird.f32 %v1138
    %vm1145 = vweird.f32 %v1139
    %vm1146 = vmor %vm1144, %vm1145
    %v1147 = vsel %vm1146, %v1139, %v1143
    %v1148 = vand.u32 2147483647, %v1138
    %vm1149 = vcmp.eq.f32.partialorder %v1148, 8.507059e+37
    %v1150 = vand.u32 %v1138, 2147483648
    %v1151 = vor.u32 1.1754944e-38, %v1150
    %v1152 = vsel %vm1149, %v1151, %v1147
    %v1153 = vmul.f32 1.0, %v1152
    %v1154 = vmul.f32 %v1153, 2.0
    %v1155 = vsub.f32 %v1154, 1.0
    %v1156 = vmul.f32 %v1153, %v1102
    %1158 = vrot.lane.b32.xlu0 %v1155, 64
    %v1159 = vpop.permute.xlu0 %1158
    %v1161 = vmul.f32 %v1153, %v1159
    %1163 = vrot.lane.b32.xlu0 %v1161, 32
    %v1164 = vpop.permute.xlu0 %1163
    %v1166 = vadd.f32 %v1156, %v1164
    %v1167 = vtanh.pop %v1166
    %1169 = vrot.lane.b32.xlu0 %v1167, 64
    %v1170 = vpop.permute.xlu0 %1169
    %v1172 = vmul.f32 %v1153, %v1170
    %1174 = vrot.lane.b32.xlu0 %v1172, 32
    %v1175 = vpop.permute.xlu0 %1174
    %v1176 = vsel %vm307, %v1175, 0
    %1178 = vmatpush.msra.mxu0 0.0
    %1179 = vmatpush.msra.mxu0 0.0
    %1180 = vmatpush.msra.mxu0 0.0
    %1181 = vmatpush.msra.mxu0 0.0
    %1182 = vmatpush.msra.mxu0 0.0
    %1183 = vmatpush.msra.mxu0 0.0
    %1184 = vmatpush.msra.mxu0 0.0
    %1185 = vmatpush.msra.mxu0 0.0
    %1186 = vmatpush.msra.mxu0 0.0
    %1187 = vmatpush.msra.mxu0 0.0
    %1188 = vmatpush.msra.mxu0 0.0
    %1189 = vmatpush.msra.mxu0 0.0
    %1190 = vmatpush.msra.mxu0 %v852
    %1191 = vmatpush.msra.mxu0 %v851
    %1192 = vmatpush.msra.mxu0 %v850
    %1193 = vmatpush.msra.mxu0 %v849
    %1194 = vmatmul.f32.gmra.mxu0 %v1176
    %v1195 = vpop.f32.mrf.mxu0
    %v1196 = vadd.f32 0.0, %v1195
    %1197 = vdwg.mxu0
    %v1198 = vadd.f32 %v911, %v1196
    %v1199 = vxor.u32 %v1198, 2147483648
    %v1200 = vmul.f32 %v1199, 1.442695
    %v1201 = vpow.pop %v1200
    %v1202 = vadd.f32 %v1201, 1.0
    %v1203 = vrcp.pop %v1202
    %v1204 = vmul.f32 %v1202, %v1203
    %v1205 = vsub.f32 1.0, %v1204
    %v1206 = vmul.f32 %v1203, %v1205
    %v1207 = vadd.f32 %v1203, %v1206
    %vm1208 = vweird.f32 %v1202
    %vm1209 = vweird.f32 %v1203
    %vm1210 = vmor %vm1208, %vm1209
    %v1211 = vsel %vm1210, %v1203, %v1207
    %v1212 = vand.u32 2147483647, %v1202
    %vm1213 = vcmp.eq.f32.partialorder %v1212, 8.507059e+37
    %v1214 = vand.u32 %v1202, 2147483648
    %v1215 = vor.u32 1.1754944e-38, %v1214
    %v1216 = vsel %vm1213, %v1215, %v1211
    %v1217 = vmul.f32 1.0, %v1216
    %v1218 = vmul.f32 %v1217, 2.0
    %v1219 = vsub.f32 %v1218, 1.0
    %v1220 = vmul.f32 %v1217, %v1166
    %1222 = vrot.lane.b32.xlu0 %v1219, 64
    %v1223 = vpop.permute.xlu0 %1222
    %v1225 = vmul.f32 %v1217, %v1223
    %1227 = vrot.lane.b32.xlu0 %v1225, 32
    %v1228 = vpop.permute.xlu0 %1227
    %v1230 = vadd.f32 %v1220, %v1228
    %v1231 = vtanh.pop %v1230
    %1233 = vrot.lane.b32.xlu0 %v1231, 64
    %v1234 = vpop.permute.xlu0 %1233
    %v1236 = vmul.f32 %v1217, %v1234
    %1238 = vrot.lane.b32.xlu0 %v1236, 32
    %v1239 = vpop.permute.xlu0 %1238
    %v1240 = vsel %vm307, %v1239, 0
    %1242 = vmatpush.msra.mxu0 0.0
    %1243 = vmatpush.msra.mxu0 0.0
    %1244 = vmatpush.msra.mxu0 0.0
    %1245 = vmatpush.msra.mxu0 0.0
    %1246 = vmatpush.msra.mxu0 0.0
    %1247 = vmatpush.msra.mxu0 0.0
    %1248 = vmatpush.msra.mxu0 0.0
    %1249 = vmatpush.msra.mxu0 0.0
    %1250 = vmatpush.msra.mxu0 0.0
    %1251 = vmatpush.msra.mxu0 0.0
    %1252 = vmatpush.msra.mxu0 0.0
    %1253 = vmatpush.msra.mxu0 0.0
    %1254 = vmatpush.msra.mxu0 %v852
    %1255 = vmatpush.msra.mxu0 %v851
    %1256 = vmatpush.msra.mxu0 %v850
    %1257 = vmatpush.msra.mxu0 %v849
    %1258 = vmatmul.f32.gmra.mxu0 %v1240
    %v1259 = vpop.f32.mrf.mxu0
    %v1260 = vadd.f32 0.0, %v1259
    %1261 = vdwg.mxu0
    %v1262 = vadd.f32 %v914, %v1260
    %v1263 = vxor.u32 %v1262, 2147483648
    %v1264 = vmul.f32 %v1263, 1.442695
    %v1265 = vpow.pop %v1264
    %v1266 = vadd.f32 %v1265, 1.0
    %v1267 = vrcp.pop %v1266
    %v1268 = vmul.f32 %v1266, %v1267
    %v1269 = vsub.f32 1.0, %v1268
    %v1270 = vmul.f32 %v1267, %v1269
    %v1271 = vadd.f32 %v1267, %v1270
    %vm1272 = vweird.f32 %v1266
    %vm1273 = vweird.f32 %v1267
    %vm1274 = vmor %vm1272, %vm1273
    %v1275 = vsel %vm1274, %v1267, %v1271
    %v1276 = vand.u32 2147483647, %v1266
    %vm1277 = vcmp.eq.f32.partialorder %v1276, 8.507059e+37
    %v1278 = vand.u32 %v1266, 2147483648
    %v1279 = vor.u32 1.1754944e-38, %v1278
    %v1280 = vsel %vm1277, %v1279, %v1275
    %v1281 = vmul.f32 1.0, %v1280
    %v1282 = vmul.f32 %v1281, 2.0
    %v1283 = vsub.f32 %v1282, 1.0
    %v1284 = vmul.f32 %v1281, %v1230
    %1286 = vrot.lane.b32.xlu0 %v1283, 64
    %v1287 = vpop.permute.xlu0 %1286
    %v1289 = vmul.f32 %v1281, %v1287
    %1291 = vrot.lane.b32.xlu0 %v1289, 32
    %v1292 = vpop.permute.xlu0 %1291
    %v1294 = vadd.f32 %v1284, %v1292
    %v1295 = vtanh.pop %v1294
    %1297 = vrot.lane.b32.xlu0 %v1295, 64
    %v1298 = vpop.permute.xlu0 %1297
    %v1300 = vmul.f32 %v1281, %v1298
    %1302 = vrot.lane.b32.xlu0 %v1300, 32
    %v1303 = vpop.permute.xlu0 %1302
    %v1304 = vsel %vm307, %v1303, 0
    %1306 = vmatpush.msra.mxu0 0.0
    %1307 = vmatpush.msra.mxu0 0.0
    %1308 = vmatpush.msra.mxu0 0.0
    %1309 = vmatpush.msra.mxu0 0.0
    %1310 = vmatpush.msra.mxu0 0.0
    %1311 = vmatpush.msra.mxu0 0.0
    %1312 = vmatpush.msra.mxu0 0.0
    %1313 = vmatpush.msra.mxu0 0.0
    %1314 = vmatpush.msra.mxu0 0.0
    %1315 = vmatpush.msra.mxu0 0.0
    %1316 = vmatpush.msra.mxu0 0.0
    %1317 = vmatpush.msra.mxu0 0.0
    %1318 = vmatpush.msra.mxu0 %v852
    %1319 = vmatpush.msra.mxu0 %v851
    %1320 = vmatpush.msra.mxu0 %v850
    %1321 = vmatpush.msra.mxu0 %v849
    %1322 = vmatmul.f32.gmra.mxu0 %v1304
    %v1323 = vpop.f32.mrf.mxu0
    %v1324 = vadd.f32 0.0, %v1323
    %1325 = vdwg.mxu0
    %v1326 = vadd.f32 %v917, %v1324
    %v1327 = vxor.u32 %v1326, 2147483648
    %v1328 = vmul.f32 %v1327, 1.442695
    %v1329 = vpow.pop %v1328
    %v1330 = vadd.f32 %v1329, 1.0
    %v1331 = vrcp.pop %v1330
    %v1332 = vmul.f32 %v1330, %v1331
    %v1333 = vsub.f32 1.0, %v1332
    %v1334 = vmul.f32 %v1331, %v1333
    %v1335 = vadd.f32 %v1331, %v1334
    %vm1336 = vweird.f32 %v1330
    %vm1337 = vweird.f32 %v1331
    %vm1338 = vmor %vm1336, %vm1337
    %v1339 = vsel %vm1338, %v1331, %v1335
    %v1340 = vand.u32 2147483647, %v1330
    %vm1341 = vcmp.eq.f32.partialorder %v1340, 8.507059e+37
    %v1342 = vand.u32 %v1330, 2147483648
    %v1343 = vor.u32 1.1754944e-38, %v1342
    %v1344 = vsel %vm1341, %v1343, %v1339
    %v1345 = vmul.f32 1.0, %v1344
    %v1346 = vmul.f32 %v1345, 2.0
    %v1347 = vsub.f32 %v1346, 1.0
    %v1348 = vmul.f32 %v1345, %v1294
    %1350 = vrot.lane.b32.xlu0 %v1347, 64
    %v1351 = vpop.permute.xlu0 %1350
    %v1353 = vmul.f32 %v1345, %v1351
    %1355 = vrot.lane.b32.xlu0 %v1353, 32
    %v1356 = vpop.permute.xlu0 %1355
    %v1358 = vadd.f32 %v1348, %v1356
    %v1359 = vtanh.pop %v1358
    %1361 = vrot.lane.b32.xlu0 %v1359, 64
    %v1362 = vpop.permute.xlu0 %1361
    %v1364 = vmul.f32 %v1345, %v1362
    %1366 = vrot.lane.b32.xlu0 %v1364, 32
    %v1367 = vpop.permute.xlu0 %1366
    %v1368 = vsel %vm307, %v1367, 0
    %1370 = vmatpush.msra.mxu0 0.0
    %1371 = vmatpush.msra.mxu0 0.0
    %1372 = vmatpush.msra.mxu0 0.0
    %1373 = vmatpush.msra.mxu0 0.0
    %1374 = vmatpush.msra.mxu0 0.0
    %1375 = vmatpush.msra.mxu0 0.0
    %1376 = vmatpush.msra.mxu0 0.0
    %1377 = vmatpush.msra.mxu0 0.0
    %1378 = vmatpush.msra.mxu0 0.0
    %1379 = vmatpush.msra.mxu0 0.0
    %1380 = vmatpush.msra.mxu0 0.0
    %1381 = vmatpush.msra.mxu0 0.0
    %1382 = vmatpush.msra.mxu0 %v852
    %1383 = vmatpush.msra.mxu0 %v851
    %1384 = vmatpush.msra.mxu0 %v850
    %1385 = vmatpush.msra.mxu0 %v849
    %1386 = vmatmul.f32.gmra.mxu0 %v1368
    %v1387 = vpop.f32.mrf.mxu0
    %v1388 = vadd.f32 0.0, %v1387
    %1389 = vdwg.mxu0
    %v1390 = vadd.f32 %v920, %v1388
    %v1391 = vxor.u32 %v1390, 2147483648
    %v1392 = vmul.f32 %v1391, 1.442695
    %v1393 = vpow.pop %v1392
    %v1394 = vadd.f32 %v1393, 1.0
    %v1395 = vrcp.pop %v1394
    %v1396 = vmul.f32 %v1394, %v1395
    %v1397 = vsub.f32 1.0, %v1396
    %v1398 = vmul.f32 %v1395, %v1397
    %v1399 = vadd.f32 %v1395, %v1398
    %vm1400 = vweird.f32 %v1394
    %vm1401 = vweird.f32 %v1395
    %vm1402 = vmor %vm1400, %vm1401
    %v1403 = vsel %vm1402, %v1395, %v1399
    %v1404 = vand.u32 2147483647, %v1394
    %vm1405 = vcmp.eq.f32.partialorder %v1404, 8.507059e+37
    %v1406 = vand.u32 %v1394, 2147483648
    %v1407 = vor.u32 1.1754944e-38, %v1406
    %v1408 = vsel %vm1405, %v1407, %v1403
    %v1409 = vmul.f32 1.0, %v1408
    %v1410 = vmul.f32 %v1409, 2.0
    %v1411 = vsub.f32 %v1410, 1.0
    %v1412 = vmul.f32 %v1409, %v1358
    %1414 = vrot.lane.b32.xlu0 %v1411, 64
    %v1415 = vpop.permute.xlu0 %1414
    %v1417 = vmul.f32 %v1409, %v1415
    %1419 = vrot.lane.b32.xlu0 %v1417, 32
    %v1420 = vpop.permute.xlu0 %1419
    %v1422 = vadd.f32 %v1412, %v1420
    %v1423 = vtanh.pop %v1422
    %1425 = vrot.lane.b32.xlu0 %v1423, 64
    %v1426 = vpop.permute.xlu0 %1425
    %v1428 = vmul.f32 %v1409, %v1426
    %v1429 = vld [vmem:[#allocation13] sm:$0xff]
    %v1430 = vld [vmem:[#allocation13 + $0x8] sm:$0xff]
    %v1431 = vld [vmem:[#allocation13 + $0x10] sm:$0xff]
    %v1432 = vld [vmem:[#allocation13 + $0x18] sm:$0xff]
    %v1433 = vld [vmem:[%s7] sm:$0x1]
    %v1435 = vperm.slane %v1433, 0
    %1438 = vrot.lane.b32.xlu0 %v1428, 32
    %v1439 = vpop.permute.xlu0 %1438
    %v1440 = vsel %vm307, %v1439, 0
    %1442 = vmatpush.msra.mxu0 0.0
    %1443 = vmatpush.msra.mxu0 0.0
    %1444 = vmatpush.msra.mxu0 0.0
    %1445 = vmatpush.msra.mxu0 0.0
    %1446 = vmatpush.msra.mxu0 0.0
    %1447 = vmatpush.msra.mxu0 0.0
    %1448 = vmatpush.msra.mxu0 0.0
    %1449 = vmatpush.msra.mxu0 0.0
    %1450 = vmatpush.msra.mxu0 0.0
    %1451 = vmatpush.msra.mxu0 0.0
    %1452 = vmatpush.msra.mxu0 0.0
    %1453 = vmatpush.msra.mxu0 0.0
    %1454 = vmatpush.msra.mxu0 %v1432
    %1455 = vmatpush.msra.mxu0 %v1431
    %1456 = vmatpush.msra.mxu0 %v1430
    %1457 = vmatpush.msra.mxu0 %v1429
    %1458 = vmatmul.f32.gmra.mxu0 %v1440
    %v1459 = vpop.f32.mrf.mxu0
    %v1460 = vadd.f32 %v1435, %v1459
    %1461 = vdwg.mxu0
    %v1462 = vxor.u32 %v1460, 2147483648
    %v1463 = vmul.f32 %v1462, 1.442695
    %v1464 = vpow.pop %v1463
    %v1465 = vadd.f32 %v1464, 1.0
    %v1466 = vrcp.pop %v1465
    %v1467 = vmul.f32 %v1465, %v1466
    %v1468 = vsub.f32 1.0, %v1467
    %v1469 = vmul.f32 %v1466, %v1468
    %v1470 = vadd.f32 %v1466, %v1469
    %vm1471 = vweird.f32 %v1465
    %vm1472 = vweird.f32 %v1466
    %vm1473 = vmor %vm1471, %vm1472
    %v1474 = vsel %vm1473, %v1466, %v1470
    %v1475 = vand.u32 2147483647, %v1465
    %vm1476 = vcmp.eq.f32.partialorder %v1475, 8.507059e+37
    %v1477 = vand.u32 %v1465, 2147483648
    %v1478 = vor.u32 1.1754944e-38, %v1477
    %v1479 = vsel %vm1476, %v1478, %v1474
    %v1480 = vmul.f32 1.0, %v1479
    %1481 = vst [vmem:[%s10] sm:$0xff] %v1480
    // Predicated region
    $region54: #{attack_detection_forward.2} parent=1 // pred_check
      _
    $region55: #{attack_detection_forward.2} parent=1 // pred_check_branch
      %1483 = sbr.rel (0) target = $region57
    $region56: #{attack_detection_forward.2} parent=1 // pred_region
      _
    $region57: #{attack_detection_forward.2} parent=1 // pred_fallthru
      _
    // Predicated region
    $region58: #{attack_detection_forward.2} parent=1 // pred_check
      _
    $region59: #{attack_detection_forward.2} parent=1 // pred_check_branch
      %1485 = sbr.rel (0) target = $region61
    $region60: #{attack_detection_forward.2} parent=1 // pred_region
      _
    $region61: #{attack_detection_forward.2} parent=1 // pred_fallthru
      _
    %1486 = vsyncpa [#allocation9], 1
    %1487 = vsyncpa [#allocation11], 1
    %1488 = vsyncpa [#allocation14], 1

</llo_original>
